<compile_context>
chip_gen: v6e
topology: v6e:2x2x1
jax: 0.10.0
libtpu: 0.0.40
codegen_flags: <defaults>
</compile_context>

<pallas_src>
import jax
import jax.numpy as jnp
from jax import lax
from jax.experimental import pallas as pl
from jax.experimental.pallas import tpu as pltpu
import numpy as np


def encoder_rnn_kernel(gih_ref, whh_ref, out_ref):
    """gih_ref: (seq, batch, 4H) precomputed x_t*w_eff + b_eff (f32, VMEM-resident)
       whh_ref: (H, 4H) recurrent weight (bf16)
       out_ref: (batch, H) final hidden state (f32)."""
    seq, batch, four_h = gih_ref.shape
    H = four_h // 4

    def step(t, carry):
        h, c = carry
        # Only h @ whh is on the critical recurrence path (input path was
        # folded + precomputed). bf16 operands, f32 accumulation on the MXU.
        gates = gih_ref[t] + jnp.dot(
            h.astype(whh_ref.dtype), whh_ref[...],
            preferred_element_type=jnp.float32)            # (batch, 4H) f32

        # PyTorch LSTMCell gate order: i, f, g, o (static 128-aligned slices).
        i_g = jax.nn.sigmoid(gates[:, 0:H])
        f_g = jax.nn.sigmoid(gates[:, H:2 * H])
        g_g = jnp.tanh(gates[:, 2 * H:3 * H])
        o_g = jax.nn.sigmoid(gates[:, 3 * H:4 * H])

        c_new = f_g * c + i_g * g_g
        h_new = o_g * jnp.tanh(c_new)
        return h_new, c_new

    h0 = jnp.zeros((batch, H), jnp.float32)
    c0 = jnp.zeros((batch, H), jnp.float32)
    # Short fixed trip-count -> unroll so the LLO scheduler can overlap the
    # MXU push of step t with the sigmoid/tanh tail of step t-1.
    h_final, _ = lax.fori_loop(0, seq, step, (h0, c0), unroll=True)
    out_ref[...] = h_final.astype(out_ref.dtype)


def encoder_rnn(x, we, be, wih, whh, bg):
    """x: (batch, ques_length) float32 -> (batch, hidden) float32.

    we : (1, E)    Linear(1,E).weight^T        be : (1, E)   Linear(1,E).bias
    wih: (E, 4H)   LSTMCell.weight_ih^T        whh: (H, 4H)  LSTMCell.weight_hh^T
    bg : (1, 4H)   b_ih + b_hh
    """
    batch, seq = x.shape
    H = whh.shape[0]

    # ---- algebraic fold of the embedding into the input->hidden path ----
    # emb @ wih == x * (we @ wih) + (be @ wih)   (input feature dim is 1)
    w_eff = jnp.dot(we, wih)                               # (1, 4H)
    b_eff = jnp.dot(be, wih) + bg                          # (1, 4H)

    # ---- lane-dense per-step input contribution, resident in VMEM ----
    # matches PyTorch time-major iteration: transpose(1,0)
    q = jnp.transpose(x).astype(jnp.float32)               # (seq, batch)
    gih = q[:, :, None] * w_eff[None, :, :] + b_eff[None, :, :]   # (seq, batch, 4H)

    whh_bf16 = whh.astype(jnp.bfloat16)                    # MXU-native operand

    # TODO(synk): if batch is a free parameter in the real workload, stack to
    # >=128 rows per call to fill the MXU row dimension (weights already resident).
    return pl.pallas_call(
        encoder_rnn_kernel,
        out_shape=jax.ShapeDtypeStruct((batch, H), jnp.float32),
        grid_spec=pltpu.PrefetchScalarGridSpec(
            num_scalar_prefetch=0,
            grid=(1,),                                     # single invocation
            in_specs=[
                pl.BlockSpec((seq, batch, 4 * H), lambda i: (0, 0, 0)),  # gih slab
                pl.BlockSpec((H, 4 * H), lambda i: (0, 0)),              # W_hh^T (bf16)
            ],
            out_specs=pl.BlockSpec((batch, H), lambda i: (0, 0)),
        ),
        compiler_params=pltpu.CompilerParams(
            dimension_semantics=("arbitrary",)),
    )(gih, whh_bf16)


def ref_forward(x, we, be, wih, whh, bg):
    """Pure-JAX f32 reference mirroring the PyTorch forward exactly."""
    q = jnp.transpose(x)[:, :, None]                       # (seq, batch, 1)
    emb = q * we[None] + be[None]                          # (seq, batch, E)
    batch = x.shape[0]
    H = whh.shape[0]
    h = jnp.zeros((batch, H), jnp.float32)
    c = jnp.zeros((batch, H), jnp.float32)
    for t in range(x.shape[1]):
        gates = emb[t] @ wih + h @ whh + bg
        i = jax.nn.sigmoid(gates[:, :H])
        f = jax.nn.sigmoid(gates[:, H:2 * H])
        g = jnp.tanh(gates[:, 2 * H:3 * H])
        o = jax.nn.sigmoid(gates[:, 3 * H:])
        c = f * c + i * g
        h = o * jnp.tanh(c)
    return h


if __name__ == "__main__":
    # Small, TPU-friendly sizes (embed/hidden = 128 for lane alignment).
    batch, seq = 8, 8
    embed_size, hidden_size = 128, 128

    key = jax.random.PRNGKey(0)
    k_x, k_we, k_be, k_wih, k_whh, k_bih, k_bhh = jax.random.split(key, 7)

    # Deterministic parameter init (PyTorch-style uniform bounds).
    x = jax.random.uniform(k_x, (batch, seq), jnp.float32, -1.0, 1.0)
    we = jax.random.uniform(k_we, (1, embed_size), jnp.float32, -1.0, 1.0)   # Linear(1,E).weight^T
    be = jax.random.uniform(k_be, (1, embed_size), jnp.float32, -1.0, 1.0)   # Linear(1,E).bias
    bound = 1.0 / np.sqrt(hidden_size)
    wih = jax.random.uniform(k_wih, (embed_size, 4 * hidden_size), jnp.float32, -bound, bound)   # W_ih^T
    whh = jax.random.uniform(k_whh, (hidden_size, 4 * hidden_size), jnp.float32, -bound, bound)  # W_hh^T
    b_ih = jax.random.uniform(k_bih, (1, 4 * hidden_size), jnp.float32, -bound, bound)
    b_hh = jax.random.uniform(k_bhh, (1, 4 * hidden_size), jnp.float32, -bound, bound)
    bg = b_ih + b_hh

    out = encoder_rnn(x, we, be, wih, whh, bg)
    out = jax.block_until_ready(out)

    ref = ref_forward(x, we, be, wih, whh, bg)
    assert out.shape == (batch, hidden_size)
    # 5e-3 tolerance covers the bf16 rounding of the recurrent-weight operand.
    np.testing.assert_allclose(np.asarray(out), np.asarray(ref), rtol=5e-3, atol=5e-3)

    print("KERNEL_OK")
</pallas_src>

<mosaic_0001>
module attributes {stable_mosaic.version = 11 : i64} {
  func.func @encoder_rnn_kernel(%arg0: i32, %arg1: memref<8x8x512xf32, #tpu.memory_space<vmem>>, %arg2: memref<128x512xbf16, #tpu.memory_space<vmem>>, %arg3: memref<8x128xf32, #tpu.memory_space<vmem>>) attributes {dimension_semantics = [#tpu.dimension_semantics<arbitrary>], iteration_bounds = array<i64: 1>, scalar_prefetch = 0 : i64, scratch_operands = 0 : i64, tpu.core_type = #tpu.core_type<tc>, window_params = [{pipeline_mode = #tpu.pipeline_mode<synchronous>, transform_indices = @transform_0, window_bounds = array<i64: 8, 8, 512>}, {pipeline_mode = #tpu.pipeline_mode<synchronous>, transform_indices = @transform_1, window_bounds = array<i64: 128, 512>}, {pipeline_mode = #tpu.pipeline_mode<synchronous>, transform_indices = @transform_2, window_bounds = array<i64: 8, 128>}]} {
    %cst = arith.constant 0.000000e+00 : f32
    %0 = vector.broadcast %cst : f32 to vector<8x128xf32>
    %cst_0 = arith.constant 0.000000e+00 : f32
    %1 = vector.broadcast %cst_0 : f32 to vector<8x128xf32>
    %c0_i32 = arith.constant 0 : i32
    %2 = arith.index_cast %c0_i32 : i32 to index
    %c0 = arith.constant 0 : index
    %c0_1 = arith.constant 0 : index
    %3 = vector.load %arg1[%2, %c0, %c0_1] : memref<8x8x512xf32, #tpu.memory_space<vmem>>, vector<1x8x512xf32>
    %4 = vector.shape_cast %3 : vector<1x8x512xf32> to vector<8x512xf32>
    %5 = arith.truncf %0 : vector<8x128xf32> to vector<8x128xbf16>
    %c0_2 = arith.constant 0 : index
    %c0_3 = arith.constant 0 : index
    %6 = vector.load %arg2[%c0_2, %c0_3] : memref<128x512xbf16, #tpu.memory_space<vmem>>, vector<128x512xbf16>
    %cst_4 = arith.constant dense<0.000000e+00> : vector<8x512xf32>
    %7 = tpu.matmul %5, %6, %cst_4 {dimension_numbers = #tpu.dot_dimension_numbers<[1], [0], [0], [1], [0, 0, 1, 1], [], []>} : vector<8x128xbf16>, vector<128x512xbf16>, vector<8x512xf32> -> vector<8x512xf32>
    %8 = arith.addf %4, %7 : vector<8x512xf32>
    %9 = vector.extract_strided_slice %8 {offsets = [0, 0], sizes = [8, 128], strides = [1, 1]} : vector<8x512xf32> to vector<8x128xf32>
    %10 = arith.negf %9 : vector<8x128xf32>
    %11 = math.exp %10 : vector<8x128xf32>
    %cst_5 = arith.constant 1.000000e+00 : f32
    %12 = vector.broadcast %cst_5 : f32 to vector<8x128xf32>
    %13 = arith.addf %12, %11 : vector<8x128xf32>
    %14 = arith.divf %12, %13 : vector<8x128xf32>
    %15 = vector.extract_strided_slice %8 {offsets = [0, 128], sizes = [8, 128], strides = [1, 1]} : vector<8x512xf32> to vector<8x128xf32>
    %16 = arith.negf %15 : vector<8x128xf32>
    %17 = math.exp %16 : vector<8x128xf32>
    %cst_6 = arith.constant 1.000000e+00 : f32
    %18 = vector.broadcast %cst_6 : f32 to vector<8x128xf32>
    %19 = arith.addf %18, %17 : vector<8x128xf32>
    %20 = arith.divf %18, %19 : vector<8x128xf32>
    %21 = vector.extract_strided_slice %8 {offsets = [0, 256], sizes = [8, 128], strides = [1, 1]} : vector<8x512xf32> to vector<8x128xf32>
    %22 = math.tanh %21 : vector<8x128xf32>
    %23 = vector.extract_strided_slice %8 {offsets = [0, 384], sizes = [8, 128], strides = [1, 1]} : vector<8x512xf32> to vector<8x128xf32>
    %24 = arith.negf %23 : vector<8x128xf32>
    %25 = math.exp %24 : vector<8x128xf32>
    %cst_7 = arith.constant 1.000000e+00 : f32
    %26 = vector.broadcast %cst_7 : f32 to vector<8x128xf32>
    %27 = arith.addf %26, %25 : vector<8x128xf32>
    %28 = arith.divf %26, %27 : vector<8x128xf32>
    %29 = arith.mulf %20, %1 : vector<8x128xf32>
    %30 = arith.mulf %14, %22 : vector<8x128xf32>
    %31 = arith.addf %29, %30 : vector<8x128xf32>
    %32 = math.tanh %31 : vector<8x128xf32>
    %33 = arith.mulf %28, %32 : vector<8x128xf32>
    %c1_i32 = arith.constant 1 : i32
    %34 = arith.index_cast %c1_i32 : i32 to index
    %c0_8 = arith.constant 0 : index
    %c0_9 = arith.constant 0 : index
    %35 = vector.load %arg1[%34, %c0_8, %c0_9] : memref<8x8x512xf32, #tpu.memory_space<vmem>>, vector<1x8x512xf32>
    %36 = vector.shape_cast %35 : vector<1x8x512xf32> to vector<8x512xf32>
    %37 = arith.truncf %33 : vector<8x128xf32> to vector<8x128xbf16>
    %c0_10 = arith.constant 0 : index
    %c0_11 = arith.constant 0 : index
    %38 = vector.load %arg2[%c0_10, %c0_11] : memref<128x512xbf16, #tpu.memory_space<vmem>>, vector<128x512xbf16>
    %cst_12 = arith.constant dense<0.000000e+00> : vector<8x512xf32>
    %39 = tpu.matmul %37, %38, %cst_12 {dimension_numbers = #tpu.dot_dimension_numbers<[1], [0], [0], [1], [0, 0, 1, 1], [], []>} : vector<8x128xbf16>, vector<128x512xbf16>, vector<8x512xf32> -> vector<8x512xf32>
    %40 = arith.addf %36, %39 : vector<8x512xf32>
    %41 = vector.extract_strided_slice %40 {offsets = [0, 0], sizes = [8, 128], strides = [1, 1]} : vector<8x512xf32> to vector<8x128xf32>
    %42 = arith.negf %41 : vector<8x128xf32>
    %43 = math.exp %42 : vector<8x128xf32>
    %cst_13 = arith.constant 1.000000e+00 : f32
    %44 = vector.broadcast %cst_13 : f32 to vector<8x128xf32>
    %45 = arith.addf %44, %43 : vector<8x128xf32>
    %46 = arith.divf %44, %45 : vector<8x128xf32>
    %47 = vector.extract_strided_slice %40 {offsets = [0, 128], sizes = [8, 128], strides = [1, 1]} : vector<8x512xf32> to vector<8x128xf32>
    %48 = arith.negf %47 : vector<8x128xf32>
    %49 = math.exp %48 : vector<8x128xf32>
    %cst_14 = arith.constant 1.000000e+00 : f32
    %50 = vector.broadcast %cst_14 : f32 to vector<8x128xf32>
    %51 = arith.addf %50, %49 : vector<8x128xf32>
    %52 = arith.divf %50, %51 : vector<8x128xf32>
    %53 = vector.extract_strided_slice %40 {offsets = [0, 256], sizes = [8, 128], strides = [1, 1]} : vector<8x512xf32> to vector<8x128xf32>
    %54 = math.tanh %53 : vector<8x128xf32>
    %55 = vector.extract_strided_slice %40 {offsets = [0, 384], sizes = [8, 128], strides = [1, 1]} : vector<8x512xf32> to vector<8x128xf32>
    %56 = arith.negf %55 : vector<8x128xf32>
    %57 = math.exp %56 : vector<8x128xf32>
    %cst_15 = arith.constant 1.000000e+00 : f32
    %58 = vector.broadcast %cst_15 : f32 to vector<8x128xf32>
    %59 = arith.addf %58, %57 : vector<8x128xf32>
    %60 = arith.divf %58, %59 : vector<8x128xf32>
    %61 = arith.mulf %52, %31 : vector<8x128xf32>
    %62 = arith.mulf %46, %54 : vector<8x128xf32>
    %63 = arith.addf %61, %62 : vector<8x128xf32>
    %64 = math.tanh %63 : vector<8x128xf32>
    %65 = arith.mulf %60, %64 : vector<8x128xf32>
    %c2_i32 = arith.constant 2 : i32
    %66 = arith.index_cast %c2_i32 : i32 to index
    %c0_16 = arith.constant 0 : index
    %c0_17 = arith.constant 0 : index
    %67 = vector.load %arg1[%66, %c0_16, %c0_17] : memref<8x8x512xf32, #tpu.memory_space<vmem>>, vector<1x8x512xf32>
    %68 = vector.shape_cast %67 : vector<1x8x512xf32> to vector<8x512xf32>
    %69 = arith.truncf %65 : vector<8x128xf32> to vector<8x128xbf16>
    %c0_18 = arith.constant 0 : index
    %c0_19 = arith.constant 0 : index
    %70 = vector.load %arg2[%c0_18, %c0_19] : memref<128x512xbf16, #tpu.memory_space<vmem>>, vector<128x512xbf16>
    %cst_20 = arith.constant dense<0.000000e+00> : vector<8x512xf32>
    %71 = tpu.matmul %69, %70, %cst_20 {dimension_numbers = #tpu.dot_dimension_numbers<[1], [0], [0], [1], [0, 0, 1, 1], [], []>} : vector<8x128xbf16>, vector<128x512xbf16>, vector<8x512xf32> -> vector<8x512xf32>
    %72 = arith.addf %68, %71 : vector<8x512xf32>
    %73 = vector.extract_strided_slice %72 {offsets = [0, 0], sizes = [8, 128], strides = [1, 1]} : vector<8x512xf32> to vector<8x128xf32>
    %74 = arith.negf %73 : vector<8x128xf32>
    %75 = math.exp %74 : vector<8x128xf32>
    %cst_21 = arith.constant 1.000000e+00 : f32
    %76 = vector.broadcast %cst_21 : f32 to vector<8x128xf32>
    %77 = arith.addf %76, %75 : vector<8x128xf32>
    %78 = arith.divf %76, %77 : vector<8x128xf32>
    %79 = vector.extract_strided_slice %72 {offsets = [0, 128], sizes = [8, 128], strides = [1, 1]} : vector<8x512xf32> to vector<8x128xf32>
    %80 = arith.negf %79 : vector<8x128xf32>
    %81 = math.exp %80 : vector<8x128xf32>
    %cst_22 = arith.constant 1.000000e+00 : f32
    %82 = vector.broadcast %cst_22 : f32 to vector<8x128xf32>
    %83 = arith.addf %82, %81 : vector<8x128xf32>
    %84 = arith.divf %82, %83 : vector<8x128xf32>
    %85 = vector.extract_strided_slice %72 {offsets = [0, 256], sizes = [8, 128], strides = [1, 1]} : vector<8x512xf32> to vector<8x128xf32>
    %86 = math.tanh %85 : vector<8x128xf32>
    %87 = vector.extract_strided_slice %72 {offsets = [0, 384], sizes = [8, 128], strides = [1, 1]} : vector<8x512xf32> to vector<8x128xf32>
    %88 = arith.negf %87 : vector<8x128xf32>
    %89 = math.exp %88 : vector<8x128xf32>
    %cst_23 = arith.constant 1.000000e+00 : f32
    %90 = vector.broadcast %cst_23 : f32 to vector<8x128xf32>
    %91 = arith.addf %90, %89 : vector<8x128xf32>
    %92 = arith.divf %90, %91 : vector<8x128xf32>
    %93 = arith.mulf %84, %63 : vector<8x128xf32>
    %94 = arith.mulf %78, %86 : vector<8x128xf32>
    %95 = arith.addf %93, %94 : vector<8x128xf32>
    %96 = math.tanh %95 : vector<8x128xf32>
    %97 = arith.mulf %92, %96 : vector<8x128xf32>
    %c3_i32 = arith.constant 3 : i32
    %98 = arith.index_cast %c3_i32 : i32 to index
    %c0_24 = arith.constant 0 : index
    %c0_25 = arith.constant 0 : index
    %99 = vector.load %arg1[%98, %c0_24, %c0_25] : memref<8x8x512xf32, #tpu.memory_space<vmem>>, vector<1x8x512xf32>
    %100 = vector.shape_cast %99 : vector<1x8x512xf32> to vector<8x512xf32>
    %101 = arith.truncf %97 : vector<8x128xf32> to vector<8x128xbf16>
    %c0_26 = arith.constant 0 : index
    %c0_27 = arith.constant 0 : index
    %102 = vector.load %arg2[%c0_26, %c0_27] : memref<128x512xbf16, #tpu.memory_space<vmem>>, vector<128x512xbf16>
    %cst_28 = arith.constant dense<0.000000e+00> : vector<8x512xf32>
    %103 = tpu.matmul %101, %102, %cst_28 {dimension_numbers = #tpu.dot_dimension_numbers<[1], [0], [0], [1], [0, 0, 1, 1], [], []>} : vector<8x128xbf16>, vector<128x512xbf16>, vector<8x512xf32> -> vector<8x512xf32>
    %104 = arith.addf %100, %103 : vector<8x512xf32>
    %105 = vector.extract_strided_slice %104 {offsets = [0, 0], sizes = [8, 128], strides = [1, 1]} : vector<8x512xf32> to vector<8x128xf32>
    %106 = arith.negf %105 : vector<8x128xf32>
    %107 = math.exp %106 : vector<8x128xf32>
    %cst_29 = arith.constant 1.000000e+00 : f32
    %108 = vector.broadcast %cst_29 : f32 to vector<8x128xf32>
    %109 = arith.addf %108, %107 : vector<8x128xf32>
    %110 = arith.divf %108, %109 : vector<8x128xf32>
    %111 = vector.extract_strided_slice %104 {offsets = [0, 128], sizes = [8, 128], strides = [1, 1]} : vector<8x512xf32> to vector<8x128xf32>
    %112 = arith.negf %111 : vector<8x128xf32>
    %113 = math.exp %112 : vector<8x128xf32>
    %cst_30 = arith.constant 1.000000e+00 : f32
    %114 = vector.broadcast %cst_30 : f32 to vector<8x128xf32>
    %115 = arith.addf %114, %113 : vector<8x128xf32>
    %116 = arith.divf %114, %115 : vector<8x128xf32>
    %117 = vector.extract_strided_slice %104 {offsets = [0, 256], sizes = [8, 128], strides = [1, 1]} : vector<8x512xf32> to vector<8x128xf32>
    %118 = math.tanh %117 : vector<8x128xf32>
    %119 = vector.extract_strided_slice %104 {offsets = [0, 384], sizes = [8, 128], strides = [1, 1]} : vector<8x512xf32> to vector<8x128xf32>
    %120 = arith.negf %119 : vector<8x128xf32>
    %121 = math.exp %120 : vector<8x128xf32>
    %cst_31 = arith.constant 1.000000e+00 : f32
    %122 = vector.broadcast %cst_31 : f32 to vector<8x128xf32>
    %123 = arith.addf %122, %121 : vector<8x128xf32>
    %124 = arith.divf %122, %123 : vector<8x128xf32>
    %125 = arith.mulf %116, %95 : vector<8x128xf32>
    %126 = arith.mulf %110, %118 : vector<8x128xf32>
    %127 = arith.addf %125, %126 : vector<8x128xf32>
    %128 = math.tanh %127 : vector<8x128xf32>
    %129 = arith.mulf %124, %128 : vector<8x128xf32>
    %c4_i32 = arith.constant 4 : i32
    %130 = arith.index_cast %c4_i32 : i32 to index
    %c0_32 = arith.constant 0 : index
    %c0_33 = arith.constant 0 : index
    %131 = vector.load %arg1[%130, %c0_32, %c0_33] : memref<8x8x512xf32, #tpu.memory_space<vmem>>, vector<1x8x512xf32>
    %132 = vector.shape_cast %131 : vector<1x8x512xf32> to vector<8x512xf32>
    %133 = arith.truncf %129 : vector<8x128xf32> to vector<8x128xbf16>
    %c0_34 = arith.constant 0 : index
    %c0_35 = arith.constant 0 : index
    %134 = vector.load %arg2[%c0_34, %c0_35] : memref<128x512xbf16, #tpu.memory_space<vmem>>, vector<128x512xbf16>
    %cst_36 = arith.constant dense<0.000000e+00> : vector<8x512xf32>
    %135 = tpu.matmul %133, %134, %cst_36 {dimension_numbers = #tpu.dot_dimension_numbers<[1], [0], [0], [1], [0, 0, 1, 1], [], []>} : vector<8x128xbf16>, vector<128x512xbf16>, vector<8x512xf32> -> vector<8x512xf32>
    %136 = arith.addf %132, %135 : vector<8x512xf32>
    %137 = vector.extract_strided_slice %136 {offsets = [0, 0], sizes = [8, 128], strides = [1, 1]} : vector<8x512xf32> to vector<8x128xf32>
    %138 = arith.negf %137 : vector<8x128xf32>
    %139 = math.exp %138 : vector<8x128xf32>
    %cst_37 = arith.constant 1.000000e+00 : f32
    %140 = vector.broadcast %cst_37 : f32 to vector<8x128xf32>
    %141 = arith.addf %140, %139 : vector<8x128xf32>
    %142 = arith.divf %140, %141 : vector<8x128xf32>
    %143 = vector.extract_strided_slice %136 {offsets = [0, 128], sizes = [8, 128], strides = [1, 1]} : vector<8x512xf32> to vector<8x128xf32>
    %144 = arith.negf %143 : vector<8x128xf32>
    %145 = math.exp %144 : vector<8x128xf32>
    %cst_38 = arith.constant 1.000000e+00 : f32
    %146 = vector.broadcast %cst_38 : f32 to vector<8x128xf32>
    %147 = arith.addf %146, %145 : vector<8x128xf32>
    %148 = arith.divf %146, %147 : vector<8x128xf32>
    %149 = vector.extract_strided_slice %136 {offsets = [0, 256], sizes = [8, 128], strides = [1, 1]} : vector<8x512xf32> to vector<8x128xf32>
    %150 = math.tanh %149 : vector<8x128xf32>
    %151 = vector.extract_strided_slice %136 {offsets = [0, 384], sizes = [8, 128], strides = [1, 1]} : vector<8x512xf32> to vector<8x128xf32>
    %152 = arith.negf %151 : vector<8x128xf32>
    %153 = math.exp %152 : vector<8x128xf32>
    %cst_39 = arith.constant 1.000000e+00 : f32
    %154 = vector.broadcast %cst_39 : f32 to vector<8x128xf32>
    %155 = arith.addf %154, %153 : vector<8x128xf32>
    %156 = arith.divf %154, %155 : vector<8x128xf32>
    %157 = arith.mulf %148, %127 : vector<8x128xf32>
    %158 = arith.mulf %142, %150 : vector<8x128xf32>
    %159 = arith.addf %157, %158 : vector<8x128xf32>
    %160 = math.tanh %159 : vector<8x128xf32>
    %161 = arith.mulf %156, %160 : vector<8x128xf32>
    %c5_i32 = arith.constant 5 : i32
    %162 = arith.index_cast %c5_i32 : i32 to index
    %c0_40 = arith.constant 0 : index
    %c0_41 = arith.constant 0 : index
    %163 = vector.load %arg1[%162, %c0_40, %c0_41] : memref<8x8x512xf32, #tpu.memory_space<vmem>>, vector<1x8x512xf32>
    %164 = vector.shape_cast %163 : vector<1x8x512xf32> to vector<8x512xf32>
    %165 = arith.truncf %161 : vector<8x128xf32> to vector<8x128xbf16>
    %c0_42 = arith.constant 0 : index
    %c0_43 = arith.constant 0 : index
    %166 = vector.load %arg2[%c0_42, %c0_43] : memref<128x512xbf16, #tpu.memory_space<vmem>>, vector<128x512xbf16>
    %cst_44 = arith.constant dense<0.000000e+00> : vector<8x512xf32>
    %167 = tpu.matmul %165, %166, %cst_44 {dimension_numbers = #tpu.dot_dimension_numbers<[1], [0], [0], [1], [0, 0, 1, 1], [], []>} : vector<8x128xbf16>, vector<128x512xbf16>, vector<8x512xf32> -> vector<8x512xf32>
    %168 = arith.addf %164, %167 : vector<8x512xf32>
    %169 = vector.extract_strided_slice %168 {offsets = [0, 0], sizes = [8, 128], strides = [1, 1]} : vector<8x512xf32> to vector<8x128xf32>
    %170 = arith.negf %169 : vector<8x128xf32>
    %171 = math.exp %170 : vector<8x128xf32>
    %cst_45 = arith.constant 1.000000e+00 : f32
    %172 = vector.broadcast %cst_45 : f32 to vector<8x128xf32>
    %173 = arith.addf %172, %171 : vector<8x128xf32>
    %174 = arith.divf %172, %173 : vector<8x128xf32>
    %175 = vector.extract_strided_slice %168 {offsets = [0, 128], sizes = [8, 128], strides = [1, 1]} : vector<8x512xf32> to vector<8x128xf32>
    %176 = arith.negf %175 : vector<8x128xf32>
    %177 = math.exp %176 : vector<8x128xf32>
    %cst_46 = arith.constant 1.000000e+00 : f32
    %178 = vector.broadcast %cst_46 : f32 to vector<8x128xf32>
    %179 = arith.addf %178, %177 : vector<8x128xf32>
    %180 = arith.divf %178, %179 : vector<8x128xf32>
    %181 = vector.extract_strided_slice %168 {offsets = [0, 256], sizes = [8, 128], strides = [1, 1]} : vector<8x512xf32> to vector<8x128xf32>
    %182 = math.tanh %181 : vector<8x128xf32>
    %183 = vector.extract_strided_slice %168 {offsets = [0, 384], sizes = [8, 128], strides = [1, 1]} : vector<8x512xf32> to vector<8x128xf32>
    %184 = arith.negf %183 : vector<8x128xf32>
    %185 = math.exp %184 : vector<8x128xf32>
    %cst_47 = arith.constant 1.000000e+00 : f32
    %186 = vector.broadcast %cst_47 : f32 to vector<8x128xf32>
    %187 = arith.addf %186, %185 : vector<8x128xf32>
    %188 = arith.divf %186, %187 : vector<8x128xf32>
    %189 = arith.mulf %180, %159 : vector<8x128xf32>
    %190 = arith.mulf %174, %182 : vector<8x128xf32>
    %191 = arith.addf %189, %190 : vector<8x128xf32>
    %192 = math.tanh %191 : vector<8x128xf32>
    %193 = arith.mulf %188, %192 : vector<8x128xf32>
    %c6_i32 = arith.constant 6 : i32
    %194 = arith.index_cast %c6_i32 : i32 to index
    %c0_48 = arith.constant 0 : index
    %c0_49 = arith.constant 0 : index
    %195 = vector.load %arg1[%194, %c0_48, %c0_49] : memref<8x8x512xf32, #tpu.memory_space<vmem>>, vector<1x8x512xf32>
    %196 = vector.shape_cast %195 : vector<1x8x512xf32> to vector<8x512xf32>
    %197 = arith.truncf %193 : vector<8x128xf32> to vector<8x128xbf16>
    %c0_50 = arith.constant 0 : index
    %c0_51 = arith.constant 0 : index
    %198 = vector.load %arg2[%c0_50, %c0_51] : memref<128x512xbf16, #tpu.memory_space<vmem>>, vector<128x512xbf16>
    %cst_52 = arith.constant dense<0.000000e+00> : vector<8x512xf32>
    %199 = tpu.matmul %197, %198, %cst_52 {dimension_numbers = #tpu.dot_dimension_numbers<[1], [0], [0], [1], [0, 0, 1, 1], [], []>} : vector<8x128xbf16>, vector<128x512xbf16>, vector<8x512xf32> -> vector<8x512xf32>
    %200 = arith.addf %196, %199 : vector<8x512xf32>
    %201 = vector.extract_strided_slice %200 {offsets = [0, 0], sizes = [8, 128], strides = [1, 1]} : vector<8x512xf32> to vector<8x128xf32>
    %202 = arith.negf %201 : vector<8x128xf32>
    %203 = math.exp %202 : vector<8x128xf32>
    %cst_53 = arith.constant 1.000000e+00 : f32
    %204 = vector.broadcast %cst_53 : f32 to vector<8x128xf32>
    %205 = arith.addf %204, %203 : vector<8x128xf32>
    %206 = arith.divf %204, %205 : vector<8x128xf32>
    %207 = vector.extract_strided_slice %200 {offsets = [0, 128], sizes = [8, 128], strides = [1, 1]} : vector<8x512xf32> to vector<8x128xf32>
    %208 = arith.negf %207 : vector<8x128xf32>
    %209 = math.exp %208 : vector<8x128xf32>
    %cst_54 = arith.constant 1.000000e+00 : f32
    %210 = vector.broadcast %cst_54 : f32 to vector<8x128xf32>
    %211 = arith.addf %210, %209 : vector<8x128xf32>
    %212 = arith.divf %210, %211 : vector<8x128xf32>
    %213 = vector.extract_strided_slice %200 {offsets = [0, 256], sizes = [8, 128], strides = [1, 1]} : vector<8x512xf32> to vector<8x128xf32>
    %214 = math.tanh %213 : vector<8x128xf32>
    %215 = vector.extract_strided_slice %200 {offsets = [0, 384], sizes = [8, 128], strides = [1, 1]} : vector<8x512xf32> to vector<8x128xf32>
    %216 = arith.negf %215 : vector<8x128xf32>
    %217 = math.exp %216 : vector<8x128xf32>
    %cst_55 = arith.constant 1.000000e+00 : f32
    %218 = vector.broadcast %cst_55 : f32 to vector<8x128xf32>
    %219 = arith.addf %218, %217 : vector<8x128xf32>
    %220 = arith.divf %218, %219 : vector<8x128xf32>
    %221 = arith.mulf %212, %191 : vector<8x128xf32>
    %222 = arith.mulf %206, %214 : vector<8x128xf32>
    %223 = arith.addf %221, %222 : vector<8x128xf32>
    %224 = math.tanh %223 : vector<8x128xf32>
    %225 = arith.mulf %220, %224 : vector<8x128xf32>
    %c7_i32 = arith.constant 7 : i32
    %226 = arith.index_cast %c7_i32 : i32 to index
    %c0_56 = arith.constant 0 : index
    %c0_57 = arith.constant 0 : index
    %227 = vector.load %arg1[%226, %c0_56, %c0_57] : memref<8x8x512xf32, #tpu.memory_space<vmem>>, vector<1x8x512xf32>
    %228 = vector.shape_cast %227 : vector<1x8x512xf32> to vector<8x512xf32>
    %229 = arith.truncf %225 : vector<8x128xf32> to vector<8x128xbf16>
    %c0_58 = arith.constant 0 : index
    %c0_59 = arith.constant 0 : index
    %230 = vector.load %arg2[%c0_58, %c0_59] : memref<128x512xbf16, #tpu.memory_space<vmem>>, vector<128x512xbf16>
    %cst_60 = arith.constant dense<0.000000e+00> : vector<8x512xf32>
    %231 = tpu.matmul %229, %230, %cst_60 {dimension_numbers = #tpu.dot_dimension_numbers<[1], [0], [0], [1], [0, 0, 1, 1], [], []>} : vector<8x128xbf16>, vector<128x512xbf16>, vector<8x512xf32> -> vector<8x512xf32>
    %232 = arith.addf %228, %231 : vector<8x512xf32>
    %233 = vector.extract_strided_slice %232 {offsets = [0, 0], sizes = [8, 128], strides = [1, 1]} : vector<8x512xf32> to vector<8x128xf32>
    %234 = arith.negf %233 : vector<8x128xf32>
    %235 = math.exp %234 : vector<8x128xf32>
    %cst_61 = arith.constant 1.000000e+00 : f32
    %236 = vector.broadcast %cst_61 : f32 to vector<8x128xf32>
    %237 = arith.addf %236, %235 : vector<8x128xf32>
    %238 = arith.divf %236, %237 : vector<8x128xf32>
    %239 = vector.extract_strided_slice %232 {offsets = [0, 128], sizes = [8, 128], strides = [1, 1]} : vector<8x512xf32> to vector<8x128xf32>
    %240 = arith.negf %239 : vector<8x128xf32>
    %241 = math.exp %240 : vector<8x128xf32>
    %cst_62 = arith.constant 1.000000e+00 : f32
    %242 = vector.broadcast %cst_62 : f32 to vector<8x128xf32>
    %243 = arith.addf %242, %241 : vector<8x128xf32>
    %244 = arith.divf %242, %243 : vector<8x128xf32>
    %245 = vector.extract_strided_slice %232 {offsets = [0, 256], sizes = [8, 128], strides = [1, 1]} : vector<8x512xf32> to vector<8x128xf32>
    %246 = math.tanh %245 : vector<8x128xf32>
    %247 = vector.extract_strided_slice %232 {offsets = [0, 384], sizes = [8, 128], strides = [1, 1]} : vector<8x512xf32> to vector<8x128xf32>
    %248 = arith.negf %247 : vector<8x128xf32>
    %249 = math.exp %248 : vector<8x128xf32>
    %cst_63 = arith.constant 1.000000e+00 : f32
    %250 = vector.broadcast %cst_63 : f32 to vector<8x128xf32>
    %251 = arith.addf %250, %249 : vector<8x128xf32>
    %252 = arith.divf %250, %251 : vector<8x128xf32>
    %253 = arith.mulf %244, %223 : vector<8x128xf32>
    %254 = arith.mulf %238, %246 : vector<8x128xf32>
    %255 = arith.addf %253, %254 : vector<8x128xf32>
    %256 = math.tanh %255 : vector<8x128xf32>
    %257 = arith.mulf %252, %256 : vector<8x128xf32>
    %c8_i32 = arith.constant 8 : i32
    %c0_64 = arith.constant 0 : index
    %c0_65 = arith.constant 0 : index
    %258 = vector.load %arg3[%c0_64, %c0_65] : memref<8x128xf32, #tpu.memory_space<vmem>>, vector<8x128xf32>
    tpu.vector_store %arg3[%c0_64, %c0_65], %257 {strides = array<i32>} : memref<8x128xf32, #tpu.memory_space<vmem>>, vector<8x128xf32>,
    return
  }
  func.func @transform_0(%arg0: i32) -> (i32, i32, i32) {
    %c0_i32 = arith.constant 0 : i32
    %c0_i32_0 = arith.constant 0 : i32
    %c0_i32_1 = arith.constant 0 : i32
    %c0_i32_2 = arith.constant 0 : i32
    return %c0_i32, %c0_i32_0, %c0_i32_1 : i32, i32, i32
  }
  func.func @transform_1(%arg0: i32) -> (i32, i32) {
    %c0_i32 = arith.constant 0 : i32
    %c0_i32_0 = arith.constant 0 : i32
    %c0_i32_1 = arith.constant 0 : i32
    return %c0_i32, %c0_i32_0 : i32, i32
  }
  func.func @transform_2(%arg0: i32) -> (i32, i32) {
    %c0_i32 = arith.constant 0 : i32
    %c0_i32_0 = arith.constant 0 : i32
    %c0_i32_1 = arith.constant 0 : i32
    return %c0_i32, %c0_i32_0 : i32, i32
  }
}

</mosaic_0001>

<llo_original>
// kernel: tpu_custom_call.1
$region0: #{tpu_custom_call.1}
  #allocation0 [shape = 'u32[]', space=smem, size = 0x4, offset = 0x4, fixed_abs, tag = 'smem constant byte address 0x4 - core index']
  #allocation1 [shape = 'u32[144,128]{1,0:T(1,128)}', space=vmem, size = 0x12000, scoped, tag = 'internal scratch']
  %s0 = inlined_call_operand.hbm [shape: f32[8,8,512], index: 0, kind: input, shape index: {}]
  %s1 = inlined_call_operand.hbm [shape: bf16[128,512], index: 1, kind: input, shape index: {}]
  %s2 = inlined_call_operand.hbm [shape: f32[8,128], index: 2, kind: output, shape index: {}]
  %s3 = sld [smem:[#allocation0]]
  $region26: #{tpu_custom_call.1} parent=0
    _
  %s5 = ssub.s32 1, %s3
  %s6 = scalar_select 0, %s5, %s3
  $region1: #{tpu_custom_call.1} parent=0
    #allocation2 [shape = 'u8[131072]{0}', space=vmem, size = 0x20000, scoped, tag = 'input window, operand 0, single buffered']
    #allocation3 [shape = 's32[1]{0}', space=sflag, size = 0x4, scoped, tag = 'scoped memory for tpu_custom_call.1']
    #allocation4 [shape = 's32[1]{0}', space=sflag, size = 0x4, scoped, tag = 'scoped memory for tpu_custom_call.1']
    #allocation5 [shape = 'u8[131072]{0}', space=vmem, size = 0x20000, scoped, tag = 'input window, operand 1, single buffered']
    #allocation6 [shape = 's32[1]{0}', space=sflag, size = 0x4, scoped, tag = 'scoped memory for tpu_custom_call.1']
    #allocation7 [shape = 'u8[4096]{0}', space=vmem, size = 0x1000, scoped, tag = 'output window, operand 0, single buffered']
    %7 = vsyncpa [#allocation3], 0
    %8 = vsyncpa [#allocation6], 0
    %9 = vsyncpa [#allocation4], 0
    // Predicated region
    $region2: #{tpu_custom_call.1} parent=1 // pred_check
      _
    $region3: #{tpu_custom_call.1} parent=1 // pred_check_branch
      %11 = sbr.rel (0) target = $region5
    $region4: #{tpu_custom_call.1} parent=1 // pred_region
      %s13 = ssub.s32 4096, 4096
      %14 = vsyncadd [#allocation3], %s13
      %s15 = sshll.u32 [#allocation2], 4
      %s16 = int_to_ptr.vmem [resolvable:$true] %s15
      %21 = dma.hbm_to_vmem [thread:$0]  %s0, 4096, %s16, [#allocation3], 512, 512, 32
    $region5: #{tpu_custom_call.1} parent=1 // pred_fallthru
      _
    // Predicated region
    $region6: #{tpu_custom_call.1} parent=1 // pred_check
      _
    $region7: #{tpu_custom_call.1} parent=1 // pred_check_branch
      %23 = sbr.rel (0) target = $region9
    $region8: #{tpu_custom_call.1} parent=1 // pred_region
      %s25 = ssub.s32 4096, 4096
      %26 = vsyncadd [#allocation6], %s25
      %s27 = sshll.u32 [#allocation5], 4
      %s28 = int_to_ptr.vmem [resolvable:$true] %s27
      %33 = dma.hbm_to_vmem [thread:$0]  %s1, 4096, %s28, [#allocation6], 256, 256, 16
    $region9: #{tpu_custom_call.1} parent=1 // pred_fallthru
      _
    // Predicated region
    $region10: #{tpu_custom_call.1} parent=1 // pred_check
      _
    $region11: #{tpu_custom_call.1} parent=1 // pred_check_branch
      %35 = sbr.rel (0) target = $region13
    $region12: #{tpu_custom_call.1} parent=1 // pred_region
      %36 = dma.done [#allocation3], 4096
    $region13: #{tpu_custom_call.1} parent=1 // pred_fallthru
      _
    // Predicated region
    $region14: #{tpu_custom_call.1} parent=1 // pred_check
      _
    $region15: #{tpu_custom_call.1} parent=1 // pred_check_branch
      %38 = sbr.rel (0) target = $region17
    $region16: #{tpu_custom_call.1} parent=1 // pred_region
      %39 = dma.done [#allocation6], 4096
    $region17: #{tpu_custom_call.1} parent=1 // pred_fallthru
      _
    %v41 = vld [vmem:[#allocation2] sm:$0xff]
    %v42 = vld [vmem:[#allocation2 + $0x8] sm:$0xff]
    %v43 = vld [vmem:[#allocation2 + $0x10] sm:$0xff]
    %v44 = vld [vmem:[#allocation2 + $0x18] sm:$0xff]
    %v45 = vld [vmem:[#allocation5] sm:$0xff]
    %v46 = vld [vmem:[#allocation5 + $0x8] sm:$0xff]
    %v47 = vld [vmem:[#allocation5 + $0x10] sm:$0xff]
    %v48 = vld [vmem:[#allocation5 + $0x18] sm:$0xff]
    %v49 = vld [vmem:[#allocation5 + $0x20] sm:$0xff]
    %v50 = vld [vmem:[#allocation5 + $0x28] sm:$0xff]
    %v51 = vld [vmem:[#allocation5 + $0x30] sm:$0xff]
    %v52 = vld [vmem:[#allocation5 + $0x38] sm:$0xff]
    %v53 = vld [vmem:[#allocation5 + $0x40] sm:$0xff]
    %v54 = vld [vmem:[#allocation5 + $0x48] sm:$0xff]
    %v55 = vld [vmem:[#allocation5 + $0x50] sm:$0xff]
    %v56 = vld [vmem:[#allocation5 + $0x58] sm:$0xff]
    %v57 = vld [vmem:[#allocation5 + $0x60] sm:$0xff]
    %v58 = vld [vmem:[#allocation5 + $0x68] sm:$0xff]
    %v59 = vld [vmem:[#allocation5 + $0x70] sm:$0xff]
    %v60 = vld [vmem:[#allocation5 + $0x78] sm:$0xff]
    %v61 = vld [vmem:[#allocation5 + $0x80] sm:$0xff]
    %v62 = vld [vmem:[#allocation5 + $0x88] sm:$0xff]
    %v63 = vld [vmem:[#allocation5 + $0x90] sm:$0xff]
    %v64 = vld [vmem:[#allocation5 + $0x98] sm:$0xff]
    %v65 = vld [vmem:[#allocation5 + $0xa0] sm:$0xff]
    %v66 = vld [vmem:[#allocation5 + $0xa8] sm:$0xff]
    %v67 = vld [vmem:[#allocation5 + $0xb0] sm:$0xff]
    %v68 = vld [vmem:[#allocation5 + $0xb8] sm:$0xff]
    %v69 = vld [vmem:[#allocation5 + $0xc0] sm:$0xff]
    %v70 = vld [vmem:[#allocation5 + $0xc8] sm:$0xff]
    %v71 = vld [vmem:[#allocation5 + $0xd0] sm:$0xff]
    %v72 = vld [vmem:[#allocation5 + $0xd8] sm:$0xff]
    %v73 = vld [vmem:[#allocation5 + $0xe0] sm:$0xff]
    %v74 = vld [vmem:[#allocation5 + $0xe8] sm:$0xff]
    %v75 = vld [vmem:[#allocation5 + $0xf0] sm:$0xff]
    %v76 = vld [vmem:[#allocation5 + $0xf8] sm:$0xff]
    %v109 = vunpack.c.l.b16 %v45
    %v110 = vunpack.c.h.b16 %v45
    %v111 = vunpack.c.l.b16 %v46
    %v112 = vunpack.c.h.b16 %v46
    %v113 = vunpack.c.l.b16 %v47
    %v114 = vunpack.c.h.b16 %v47
    %v115 = vunpack.c.l.b16 %v48
    %v116 = vunpack.c.h.b16 %v48
    %v117 = vunpack.c.l.b16 %v49
    %v118 = vunpack.c.h.b16 %v49
    %v119 = vunpack.c.l.b16 %v50
    %v120 = vunpack.c.h.b16 %v50
    %v121 = vunpack.c.l.b16 %v51
    %v122 = vunpack.c.h.b16 %v51
    %v123 = vunpack.c.l.b16 %v52
    %v124 = vunpack.c.h.b16 %v52
    %v125 = vunpack.c.l.b16 %v53
    %v126 = vunpack.c.h.b16 %v53
    %v127 = vunpack.c.l.b16 %v54
    %v128 = vunpack.c.h.b16 %v54
    %v129 = vunpack.c.l.b16 %v55
    %v130 = vunpack.c.h.b16 %v55
    %v131 = vunpack.c.l.b16 %v56
    %v132 = vunpack.c.h.b16 %v56
    %v133 = vunpack.c.l.b16 %v57
    %v134 = vunpack.c.h.b16 %v57
    %v135 = vunpack.c.l.b16 %v58
    %v136 = vunpack.c.h.b16 %v58
    %v137 = vunpack.c.l.b16 %v59
    %v138 = vunpack.c.h.b16 %v59
    %v139 = vunpack.c.l.b16 %v60
    %v140 = vunpack.c.h.b16 %v60
    %v141 = vunpack.c.l.b16 %v61
    %v142 = vunpack.c.h.b16 %v61
    %v143 = vunpack.c.l.b16 %v62
    %v144 = vunpack.c.h.b16 %v62
    %v145 = vunpack.c.l.b16 %v63
    %v146 = vunpack.c.h.b16 %v63
    %v147 = vunpack.c.l.b16 %v64
    %v148 = vunpack.c.h.b16 %v64
    %v149 = vunpack.c.l.b16 %v65
    %v150 = vunpack.c.h.b16 %v65
    %v151 = vunpack.c.l.b16 %v66
    %v152 = vunpack.c.h.b16 %v66
    %v153 = vunpack.c.l.b16 %v67
    %v154 = vunpack.c.h.b16 %v67
    %v155 = vunpack.c.l.b16 %v68
    %v156 = vunpack.c.h.b16 %v68
    %v157 = vunpack.c.l.b16 %v69
    %v158 = vunpack.c.h.b16 %v69
    %v159 = vunpack.c.l.b16 %v70
    %v160 = vunpack.c.h.b16 %v70
    %v161 = vunpack.c.l.b16 %v71
    %v162 = vunpack.c.h.b16 %v71
    %v163 = vunpack.c.l.b16 %v72
    %v164 = vunpack.c.h.b16 %v72
    %v165 = vunpack.c.l.b16 %v73
    %v166 = vunpack.c.h.b16 %v73
    %v167 = vunpack.c.l.b16 %v74
    %v168 = vunpack.c.h.b16 %v74
    %v169 = vunpack.c.l.b16 %v75
    %v170 = vunpack.c.h.b16 %v75
    %v171 = vunpack.c.l.b16 %v76
    %v172 = vunpack.c.h.b16 %v76
    %v173 = vpack.c.b16 %v113, %v109
    %v174 = vpack.c.b16 %v114, %v110
    %v175 = vpack.c.b16 %v115, %v111
    %v176 = vpack.c.b16 %v116, %v112
    %v177 = vpack.c.b16 %v121, %v117
    %v178 = vpack.c.b16 %v122, %v118
    %v179 = vpack.c.b16 %v123, %v119
    %v180 = vpack.c.b16 %v124, %v120
    %v181 = vpack.c.b16 %v129, %v125
    %v182 = vpack.c.b16 %v130, %v126
    %v183 = vpack.c.b16 %v131, %v127
    %v184 = vpack.c.b16 %v132, %v128
    %v185 = vpack.c.b16 %v137, %v133
    %v186 = vpack.c.b16 %v138, %v134
    %v187 = vpack.c.b16 %v139, %v135
    %v188 = vpack.c.b16 %v140, %v136
    %v189 = vpack.c.b16 %v145, %v141
    %v190 = vpack.c.b16 %v146, %v142
    %v191 = vpack.c.b16 %v147, %v143
    %v192 = vpack.c.b16 %v148, %v144
    %v193 = vpack.c.b16 %v153, %v149
    %v194 = vpack.c.b16 %v154, %v150
    %v195 = vpack.c.b16 %v155, %v151
    %v196 = vpack.c.b16 %v156, %v152
    %v197 = vpack.c.b16 %v161, %v157
    %v198 = vpack.c.b16 %v162, %v158
    %v199 = vpack.c.b16 %v163, %v159
    %v200 = vpack.c.b16 %v164, %v160
    %v201 = vpack.c.b16 %v169, %v165
    %v202 = vpack.c.b16 %v170, %v166
    %v203 = vpack.c.b16 %v171, %v167
    %v204 = vpack.c.b16 %v172, %v168
    %237 = vmatprep.subr.bf16.mxu0 %v202
    %238 = vmatpush1.bf16.msra.mxu0 %v201
    %239 = vmatprep.subr.bf16.mxu0 %v198
    %240 = vmatpush1.bf16.msra.mxu0 %v197
    %241 = vmatprep.subr.bf16.mxu0 %v194
    %242 = vmatpush1.bf16.msra.mxu0 %v193
    %243 = vmatprep.subr.bf16.mxu0 %v190
    %244 = vmatpush1.bf16.msra.mxu0 %v189
    %245 = vmatprep.subr.bf16.mxu0 %v186
    %246 = vmatpush1.bf16.msra.mxu0 %v185
    %247 = vmatprep.subr.bf16.mxu0 %v182
    %248 = vmatpush1.bf16.msra.mxu0 %v181
    %249 = vmatprep.subr.bf16.mxu0 %v178
    %250 = vmatpush1.bf16.msra.mxu0 %v177
    %251 = vmatprep.subr.bf16.mxu0 %v174
    %252 = vmatpush1.bf16.msra.mxu0 %v173
    %253 = vmatprep.subr.bf16.mxu0 0
    %254 = vmatpush2.bf16.msra.mxu0 0
    %255 = vmatprep.subr.bf16.mxu0 0
    %256 = vmatpush2.bf16.msra.mxu0 0
    %257 = vmatprep.subr.bf16.mxu0 0
    %258 = vmatpush2.bf16.msra.mxu0 0
    %259 = vmatprep.subr.bf16.mxu0 0
    %260 = vmatpush2.bf16.msra.mxu0 0
    %261 = vmatprep.subr.bf16.mxu0 0
    %262 = vmatpush2.bf16.msra.mxu0 0
    %263 = vmatprep.subr.bf16.mxu0 0
    %264 = vmatpush2.bf16.msra.mxu0 0
    %265 = vmatprep.subr.bf16.mxu0 0
    %266 = vmatpush2.bf16.msra.mxu0 0
    %267 = vmatprep.subr.bf16.mxu0 0
    %268 = vmatpush2.bf16.msra.mxu0 0
    %269 = vmatprep.mubr.bf16.mxu0 0
    %270 = vmatmul.mubr.bf16.gmra.mxu0 0
    %v271 = vpop.f32.mrf.mxu0
    %v272 = vadd.f32 0.0, %v271
    %v273 = vpop.f32.mrf.mxu0
    %v274 = vadd.f32 0.0, %v273
    %v275 = vpop.f32.mrf.mxu0
    %v276 = vpop.f32.mrf.mxu0
    %277 = vdwg.mxu0
    %278 = vmatprep.subr.bf16.mxu0 %v204
    %279 = vmatpush1.bf16.msra.mxu0 %v203
    %280 = vmatprep.subr.bf16.mxu0 %v200
    %281 = vmatpush1.bf16.msra.mxu0 %v199
    %282 = vmatprep.subr.bf16.mxu0 %v196
    %283 = vmatpush1.bf16.msra.mxu0 %v195
    %284 = vmatprep.subr.bf16.mxu0 %v192
    %285 = vmatpush1.bf16.msra.mxu0 %v191
    %286 = vmatprep.subr.bf16.mxu0 %v188
    %287 = vmatpush1.bf16.msra.mxu0 %v187
    %288 = vmatprep.subr.bf16.mxu0 %v184
    %289 = vmatpush1.bf16.msra.mxu0 %v183
    %290 = vmatprep.subr.bf16.mxu0 %v180
    %291 = vmatpush1.bf16.msra.mxu0 %v179
    %292 = vmatprep.subr.bf16.mxu0 %v176
    %293 = vmatpush1.bf16.msra.mxu0 %v175
    %294 = vmatprep.subr.bf16.mxu0 0
    %295 = vmatpush2.bf16.msra.mxu0 0
    %296 = vmatprep.subr.bf16.mxu0 0
    %297 = vmatpush2.bf16.msra.mxu0 0
    %298 = vmatprep.subr.bf16.mxu0 0
    %299 = vmatpush2.bf16.msra.mxu0 0
    %300 = vmatprep.subr.bf16.mxu0 0
    %301 = vmatpush2.bf16.msra.mxu0 0
    %302 = vmatprep.subr.bf16.mxu0 0
    %303 = vmatpush2.bf16.msra.mxu0 0
    %304 = vmatprep.subr.bf16.mxu0 0
    %305 = vmatpush2.bf16.msra.mxu0 0
    %306 = vmatprep.subr.bf16.mxu0 0
    %307 = vmatpush2.bf16.msra.mxu0 0
    %308 = vmatprep.subr.bf16.mxu0 0
    %309 = vmatpush2.bf16.msra.mxu0 0
    %310 = vmatprep.mubr.bf16.mxu0 0
    %311 = vmatmul.mubr.bf16.gmra.mxu0 0
    %v312 = vpop.f32.mrf.mxu0
    %v313 = vadd.f32 0.0, %v312
    %v314 = vpop.f32.mrf.mxu0
    %v315 = vadd.f32 0.0, %v314
    %v316 = vpop.f32.mrf.mxu0
    %v317 = vpop.f32.mrf.mxu0
    %318 = vdwg.mxu0
    %v319 = vadd.f32 %v41, %v272
    %v320 = vadd.f32 %v42, %v274
    %v321 = vadd.f32 %v43, %v313
    %v322 = vadd.f32 %v44, %v315
    %v323 = vxor.u32 %v319, 2147483648
    %v324 = vmul.f32 %v323, 1.442695
    %v325 = vpow.pop %v324
    %v326 = vadd.f32 %v325, 1.0
    %v327 = vrcp.pop %v326
    %v328 = vmul.f32 1.0, %v327
    %v329 = vxor.u32 %v320, 2147483648
    %v330 = vmul.f32 %v329, 1.442695
    %v331 = vpow.pop %v330
    %v332 = vadd.f32 %v331, 1.0
    %v333 = vrcp.pop %v332
    %v334 = vmul.f32 1.0, %v333
    %v335 = vtanh.pop %v321
    %v336 = vxor.u32 %v322, 2147483648
    %v337 = vmul.f32 %v336, 1.442695
    %v338 = vpow.pop %v337
    %v339 = vadd.f32 %v338, 1.0
    %v340 = vrcp.pop %v339
    %v341 = vmul.f32 1.0, %v340
    %v342 = vmul.f32 %v334, 0.0
    %v343 = vmul.f32 %v328, %v335
    %v344 = vadd.f32 %v342, %v343
    %v345 = vtanh.pop %v344
    %v346 = vmul.f32 %v341, %v345
    %s347 = scalar_lea.vmem [#allocation2], 32
    %v348 = vld [vmem:[%s347] sm:$0xff]
    %v349 = vld [vmem:[%s347 + $0x8] sm:$0xff]
    %v350 = vld [vmem:[%s347 + $0x10] sm:$0xff]
    %v351 = vld [vmem:[%s347 + $0x18] sm:$0xff]
    %v352 = vpack.c.bf16 %v346, %v346
    %353 = vmatprep.subr.bf16.mxu0 %v202
    %354 = vmatpush1.bf16.msra.mxu0 %v201
    %355 = vmatprep.subr.bf16.mxu0 %v198
    %356 = vmatpush1.bf16.msra.mxu0 %v197
    %357 = vmatprep.subr.bf16.mxu0 %v194
    %358 = vmatpush1.bf16.msra.mxu0 %v193
    %359 = vmatprep.subr.bf16.mxu0 %v190
    %360 = vmatpush1.bf16.msra.mxu0 %v189
    %361 = vmatprep.subr.bf16.mxu0 %v186
    %362 = vmatpush1.bf16.msra.mxu0 %v185
    %363 = vmatprep.subr.bf16.mxu0 %v182
    %364 = vmatpush1.bf16.msra.mxu0 %v181
    %365 = vmatprep.subr.bf16.mxu0 %v178
    %366 = vmatpush1.bf16.msra.mxu0 %v177
    %367 = vmatprep.subr.bf16.mxu0 %v174
    %368 = vmatpush1.bf16.msra.mxu0 %v173
    %369 = vmatprep.subr.bf16.mxu0 0
    %370 = vmatpush2.bf16.msra.mxu0 0
    %371 = vmatprep.subr.bf16.mxu0 0
    %372 = vmatpush2.bf16.msra.mxu0 0
    %373 = vmatprep.subr.bf16.mxu0 0
    %374 = vmatpush2.bf16.msra.mxu0 0
    %375 = vmatprep.subr.bf16.mxu0 0
    %376 = vmatpush2.bf16.msra.mxu0 0
    %377 = vmatprep.subr.bf16.mxu0 0
    %378 = vmatpush2.bf16.msra.mxu0 0
    %379 = vmatprep.subr.bf16.mxu0 0
    %380 = vmatpush2.bf16.msra.mxu0 0
    %381 = vmatprep.subr.bf16.mxu0 0
    %382 = vmatpush2.bf16.msra.mxu0 0
    %383 = vmatprep.subr.bf16.mxu0 0
    %384 = vmatpush2.bf16.msra.mxu0 0
    %385 = vmatprep.mubr.bf16.mxu0 0
    %386 = vmatmul.mubr.bf16.gmra.mxu0 %v352
    %v387 = vpop.f32.mrf.mxu0
    %v388 = vadd.f32 0.0, %v387
    %v389 = vpop.f32.mrf.mxu0
    %v390 = vadd.f32 0.0, %v389
    %v391 = vpop.f32.mrf.mxu0
    %v392 = vpop.f32.mrf.mxu0
    %393 = vdwg.mxu0
    %394 = vmatprep.subr.bf16.mxu0 %v204
    %395 = vmatpush1.bf16.msra.mxu0 %v203
    %396 = vmatprep.subr.bf16.mxu0 %v200
    %397 = vmatpush1.bf16.msra.mxu0 %v199
    %398 = vmatprep.subr.bf16.mxu0 %v196
    %399 = vmatpush1.bf16.msra.mxu0 %v195
    %400 = vmatprep.subr.bf16.mxu0 %v192
    %401 = vmatpush1.bf16.msra.mxu0 %v191
    %402 = vmatprep.subr.bf16.mxu0 %v188
    %403 = vmatpush1.bf16.msra.mxu0 %v187
    %404 = vmatprep.subr.bf16.mxu0 %v184
    %405 = vmatpush1.bf16.msra.mxu0 %v183
    %406 = vmatprep.subr.bf16.mxu0 %v180
    %407 = vmatpush1.bf16.msra.mxu0 %v179
    %408 = vmatprep.subr.bf16.mxu0 %v176
    %409 = vmatpush1.bf16.msra.mxu0 %v175
    %410 = vmatprep.subr.bf16.mxu0 0
    %411 = vmatpush2.bf16.msra.mxu0 0
    %412 = vmatprep.subr.bf16.mxu0 0
    %413 = vmatpush2.bf16.msra.mxu0 0
    %414 = vmatprep.subr.bf16.mxu0 0
    %415 = vmatpush2.bf16.msra.mxu0 0
    %416 = vmatprep.subr.bf16.mxu0 0
    %417 = vmatpush2.bf16.msra.mxu0 0
    %418 = vmatprep.subr.bf16.mxu0 0
    %419 = vmatpush2.bf16.msra.mxu0 0
    %420 = vmatprep.subr.bf16.mxu0 0
    %421 = vmatpush2.bf16.msra.mxu0 0
    %422 = vmatprep.subr.bf16.mxu0 0
    %423 = vmatpush2.bf16.msra.mxu0 0
    %424 = vmatprep.subr.bf16.mxu0 0
    %425 = vmatpush2.bf16.msra.mxu0 0
    %426 = vmatprep.mubr.bf16.mxu0 0
    %427 = vmatmul.mubr.bf16.gmra.mxu0 %v352
    %v428 = vpop.f32.mrf.mxu0
    %v429 = vadd.f32 0.0, %v428
    %v430 = vpop.f32.mrf.mxu0
    %v431 = vadd.f32 0.0, %v430
    %v432 = vpop.f32.mrf.mxu0
    %v433 = vpop.f32.mrf.mxu0
    %434 = vdwg.mxu0
    %v435 = vadd.f32 %v348, %v388
    %v436 = vadd.f32 %v349, %v390
    %v437 = vadd.f32 %v350, %v429
    %v438 = vadd.f32 %v351, %v431
    %v439 = vxor.u32 %v435, 2147483648
    %v440 = vmul.f32 %v439, 1.442695
    %v441 = vpow.pop %v440
    %v442 = vadd.f32 %v441, 1.0
    %v443 = vrcp.pop %v442
    %v444 = vmul.f32 1.0, %v443
    %v445 = vxor.u32 %v436, 2147483648
    %v446 = vmul.f32 %v445, 1.442695
    %v447 = vpow.pop %v446
    %v448 = vadd.f32 %v447, 1.0
    %v449 = vrcp.pop %v448
    %v450 = vmul.f32 1.0, %v449
    %v451 = vtanh.pop %v437
    %v452 = vxor.u32 %v438, 2147483648
    %v453 = vmul.f32 %v452, 1.442695
    %v454 = vpow.pop %v453
    %v455 = vadd.f32 %v454, 1.0
    %v456 = vrcp.pop %v455
    %v457 = vmul.f32 1.0, %v456
    %v458 = vmul.f32 %v450, %v344
    %v459 = vmul.f32 %v444, %v451
    %v460 = vadd.f32 %v458, %v459
    %v461 = vtanh.pop %v460
    %v462 = vmul.f32 %v457, %v461
    %s463 = scalar_lea.vmem [#allocation2], 64
    %v464 = vld [vmem:[%s463] sm:$0xff]
    %v465 = vld [vmem:[%s463 + $0x8] sm:$0xff]
    %v466 = vld [vmem:[%s463 + $0x10] sm:$0xff]
    %v467 = vld [vmem:[%s463 + $0x18] sm:$0xff]
    %v468 = vpack.c.bf16 %v462, %v462
    %469 = vmatprep.subr.bf16.mxu0 %v202
    %470 = vmatpush1.bf16.msra.mxu0 %v201
    %471 = vmatprep.subr.bf16.mxu0 %v198
    %472 = vmatpush1.bf16.msra.mxu0 %v197
    %473 = vmatprep.subr.bf16.mxu0 %v194
    %474 = vmatpush1.bf16.msra.mxu0 %v193
    %475 = vmatprep.subr.bf16.mxu0 %v190
    %476 = vmatpush1.bf16.msra.mxu0 %v189
    %477 = vmatprep.subr.bf16.mxu0 %v186
    %478 = vmatpush1.bf16.msra.mxu0 %v185
    %479 = vmatprep.subr.bf16.mxu0 %v182
    %480 = vmatpush1.bf16.msra.mxu0 %v181
    %481 = vmatprep.subr.bf16.mxu0 %v178
    %482 = vmatpush1.bf16.msra.mxu0 %v177
    %483 = vmatprep.subr.bf16.mxu0 %v174
    %484 = vmatpush1.bf16.msra.mxu0 %v173
    %485 = vmatprep.subr.bf16.mxu0 0
    %486 = vmatpush2.bf16.msra.mxu0 0
    %487 = vmatprep.subr.bf16.mxu0 0
    %488 = vmatpush2.bf16.msra.mxu0 0
    %489 = vmatprep.subr.bf16.mxu0 0
    %490 = vmatpush2.bf16.msra.mxu0 0
    %491 = vmatprep.subr.bf16.mxu0 0
    %492 = vmatpush2.bf16.msra.mxu0 0
    %493 = vmatprep.subr.bf16.mxu0 0
    %494 = vmatpush2.bf16.msra.mxu0 0
    %495 = vmatprep.subr.bf16.mxu0 0
    %496 = vmatpush2.bf16.msra.mxu0 0
    %497 = vmatprep.subr.bf16.mxu0 0
    %498 = vmatpush2.bf16.msra.mxu0 0
    %499 = vmatprep.subr.bf16.mxu0 0
    %500 = vmatpush2.bf16.msra.mxu0 0
    %501 = vmatprep.mubr.bf16.mxu0 0
    %502 = vmatmul.mubr.bf16.gmra.mxu0 %v468
    %v503 = vpop.f32.mrf.mxu0
    %v504 = vadd.f32 0.0, %v503
    %v505 = vpop.f32.mrf.mxu0
    %v506 = vadd.f32 0.0, %v505
    %v507 = vpop.f32.mrf.mxu0
    %v508 = vpop.f32.mrf.mxu0
    %509 = vdwg.mxu0
    %510 = vmatprep.subr.bf16.mxu0 %v204
    %511 = vmatpush1.bf16.msra.mxu0 %v203
    %512 = vmatprep.subr.bf16.mxu0 %v200
    %513 = vmatpush1.bf16.msra.mxu0 %v199
    %514 = vmatprep.subr.bf16.mxu0 %v196
    %515 = vmatpush1.bf16.msra.mxu0 %v195
    %516 = vmatprep.subr.bf16.mxu0 %v192
    %517 = vmatpush1.bf16.msra.mxu0 %v191
    %518 = vmatprep.subr.bf16.mxu0 %v188
    %519 = vmatpush1.bf16.msra.mxu0 %v187
    %520 = vmatprep.subr.bf16.mxu0 %v184
    %521 = vmatpush1.bf16.msra.mxu0 %v183
    %522 = vmatprep.subr.bf16.mxu0 %v180
    %523 = vmatpush1.bf16.msra.mxu0 %v179
    %524 = vmatprep.subr.bf16.mxu0 %v176
    %525 = vmatpush1.bf16.msra.mxu0 %v175
    %526 = vmatprep.subr.bf16.mxu0 0
    %527 = vmatpush2.bf16.msra.mxu0 0
    %528 = vmatprep.subr.bf16.mxu0 0
    %529 = vmatpush2.bf16.msra.mxu0 0
    %530 = vmatprep.subr.bf16.mxu0 0
    %531 = vmatpush2.bf16.msra.mxu0 0
    %532 = vmatprep.subr.bf16.mxu0 0
    %533 = vmatpush2.bf16.msra.mxu0 0
    %534 = vmatprep.subr.bf16.mxu0 0
    %535 = vmatpush2.bf16.msra.mxu0 0
    %536 = vmatprep.subr.bf16.mxu0 0
    %537 = vmatpush2.bf16.msra.mxu0 0
    %538 = vmatprep.subr.bf16.mxu0 0
    %539 = vmatpush2.bf16.msra.mxu0 0
    %540 = vmatprep.subr.bf16.mxu0 0
    %541 = vmatpush2.bf16.msra.mxu0 0
    %542 = vmatprep.mubr.bf16.mxu0 0
    %543 = vmatmul.mubr.bf16.gmra.mxu0 %v468
    %v544 = vpop.f32.mrf.mxu0
    %v545 = vadd.f32 0.0, %v544
    %v546 = vpop.f32.mrf.mxu0
    %v547 = vadd.f32 0.0, %v546
    %v548 = vpop.f32.mrf.mxu0
    %v549 = vpop.f32.mrf.mxu0
    %550 = vdwg.mxu0
    %v551 = vadd.f32 %v464, %v504
    %v552 = vadd.f32 %v465, %v506
    %v553 = vadd.f32 %v466, %v545
    %v554 = vadd.f32 %v467, %v547
    %v555 = vxor.u32 %v551, 2147483648
    %v556 = vmul.f32 %v555, 1.442695
    %v557 = vpow.pop %v556
    %v558 = vadd.f32 %v557, 1.0
    %v559 = vrcp.pop %v558
    %v560 = vmul.f32 1.0, %v559
    %v561 = vxor.u32 %v552, 2147483648
    %v562 = vmul.f32 %v561, 1.442695
    %v563 = vpow.pop %v562
    %v564 = vadd.f32 %v563, 1.0
    %v565 = vrcp.pop %v564
    %v566 = vmul.f32 1.0, %v565
    %v567 = vtanh.pop %v553
    %v568 = vxor.u32 %v554, 2147483648
    %v569 = vmul.f32 %v568, 1.442695
    %v570 = vpow.pop %v569
    %v571 = vadd.f32 %v570, 1.0
    %v572 = vrcp.pop %v571
    %v573 = vmul.f32 1.0, %v572
    %v574 = vmul.f32 %v566, %v460
    %v575 = vmul.f32 %v560, %v567
    %v576 = vadd.f32 %v574, %v575
    %v577 = vtanh.pop %v576
    %v578 = vmul.f32 %v573, %v577
    %s579 = scalar_lea.vmem [#allocation2], 96
    %v580 = vld [vmem:[%s579] sm:$0xff]
    %v581 = vld [vmem:[%s579 + $0x8] sm:$0xff]
    %v582 = vld [vmem:[%s579 + $0x10] sm:$0xff]
    %v583 = vld [vmem:[%s579 + $0x18] sm:$0xff]
    %v584 = vpack.c.bf16 %v578, %v578
    %585 = vmatprep.subr.bf16.mxu0 %v202
    %586 = vmatpush1.bf16.msra.mxu0 %v201
    %587 = vmatprep.subr.bf16.mxu0 %v198
    %588 = vmatpush1.bf16.msra.mxu0 %v197
    %589 = vmatprep.subr.bf16.mxu0 %v194
    %590 = vmatpush1.bf16.msra.mxu0 %v193
    %591 = vmatprep.subr.bf16.mxu0 %v190
    %592 = vmatpush1.bf16.msra.mxu0 %v189
    %593 = vmatprep.subr.bf16.mxu0 %v186
    %594 = vmatpush1.bf16.msra.mxu0 %v185
    %595 = vmatprep.subr.bf16.mxu0 %v182
    %596 = vmatpush1.bf16.msra.mxu0 %v181
    %597 = vmatprep.subr.bf16.mxu0 %v178
    %598 = vmatpush1.bf16.msra.mxu0 %v177
    %599 = vmatprep.subr.bf16.mxu0 %v174
    %600 = vmatpush1.bf16.msra.mxu0 %v173
    %601 = vmatprep.subr.bf16.mxu0 0
    %602 = vmatpush2.bf16.msra.mxu0 0
    %603 = vmatprep.subr.bf16.mxu0 0
    %604 = vmatpush2.bf16.msra.mxu0 0
    %605 = vmatprep.subr.bf16.mxu0 0
    %606 = vmatpush2.bf16.msra.mxu0 0
    %607 = vmatprep.subr.bf16.mxu0 0
    %608 = vmatpush2.bf16.msra.mxu0 0
    %609 = vmatprep.subr.bf16.mxu0 0
    %610 = vmatpush2.bf16.msra.mxu0 0
    %611 = vmatprep.subr.bf16.mxu0 0
    %612 = vmatpush2.bf16.msra.mxu0 0
    %613 = vmatprep.subr.bf16.mxu0 0
    %614 = vmatpush2.bf16.msra.mxu0 0
    %615 = vmatprep.subr.bf16.mxu0 0
    %616 = vmatpush2.bf16.msra.mxu0 0
    %617 = vmatprep.mubr.bf16.mxu0 0
    %618 = vmatmul.mubr.bf16.gmra.mxu0 %v584
    %v619 = vpop.f32.mrf.mxu0
    %v620 = vadd.f32 0.0, %v619
    %v621 = vpop.f32.mrf.mxu0
    %v622 = vadd.f32 0.0, %v621
    %v623 = vpop.f32.mrf.mxu0
    %v624 = vpop.f32.mrf.mxu0
    %625 = vdwg.mxu0
    %626 = vmatprep.subr.bf16.mxu0 %v204
    %627 = vmatpush1.bf16.msra.mxu0 %v203
    %628 = vmatprep.subr.bf16.mxu0 %v200
    %629 = vmatpush1.bf16.msra.mxu0 %v199
    %630 = vmatprep.subr.bf16.mxu0 %v196
    %631 = vmatpush1.bf16.msra.mxu0 %v195
    %632 = vmatprep.subr.bf16.mxu0 %v192
    %633 = vmatpush1.bf16.msra.mxu0 %v191
    %634 = vmatprep.subr.bf16.mxu0 %v188
    %635 = vmatpush1.bf16.msra.mxu0 %v187
    %636 = vmatprep.subr.bf16.mxu0 %v184
    %637 = vmatpush1.bf16.msra.mxu0 %v183
    %638 = vmatprep.subr.bf16.mxu0 %v180
    %639 = vmatpush1.bf16.msra.mxu0 %v179
    %640 = vmatprep.subr.bf16.mxu0 %v176
    %641 = vmatpush1.bf16.msra.mxu0 %v175
    %642 = vmatprep.subr.bf16.mxu0 0
    %643 = vmatpush2.bf16.msra.mxu0 0
    %644 = vmatprep.subr.bf16.mxu0 0
    %645 = vmatpush2.bf16.msra.mxu0 0
    %646 = vmatprep.subr.bf16.mxu0 0
    %647 = vmatpush2.bf16.msra.mxu0 0
    %648 = vmatprep.subr.bf16.mxu0 0
    %649 = vmatpush2.bf16.msra.mxu0 0
    %650 = vmatprep.subr.bf16.mxu0 0
    %651 = vmatpush2.bf16.msra.mxu0 0
    %652 = vmatprep.subr.bf16.mxu0 0
    %653 = vmatpush2.bf16.msra.mxu0 0
    %654 = vmatprep.subr.bf16.mxu0 0
    %655 = vmatpush2.bf16.msra.mxu0 0
    %656 = vmatprep.subr.bf16.mxu0 0
    %657 = vmatpush2.bf16.msra.mxu0 0
    %658 = vmatprep.mubr.bf16.mxu0 0
    %659 = vmatmul.mubr.bf16.gmra.mxu0 %v584
    %v660 = vpop.f32.mrf.mxu0
    %v661 = vadd.f32 0.0, %v660
    %v662 = vpop.f32.mrf.mxu0
    %v663 = vadd.f32 0.0, %v662
    %v664 = vpop.f32.mrf.mxu0
    %v665 = vpop.f32.mrf.mxu0
    %666 = vdwg.mxu0
    %v667 = vadd.f32 %v580, %v620
    %v668 = vadd.f32 %v581, %v622
    %v669 = vadd.f32 %v582, %v661
    %v670 = vadd.f32 %v583, %v663
    %v671 = vxor.u32 %v667, 2147483648
    %v672 = vmul.f32 %v671, 1.442695
    %v673 = vpow.pop %v672
    %v674 = vadd.f32 %v673, 1.0
    %v675 = vrcp.pop %v674
    %v676 = vmul.f32 1.0, %v675
    %v677 = vxor.u32 %v668, 2147483648
    %v678 = vmul.f32 %v677, 1.442695
    %v679 = vpow.pop %v678
    %v680 = vadd.f32 %v679, 1.0
    %v681 = vrcp.pop %v680
    %v682 = vmul.f32 1.0, %v681
    %v683 = vtanh.pop %v669
    %v684 = vxor.u32 %v670, 2147483648
    %v685 = vmul.f32 %v684, 1.442695
    %v686 = vpow.pop %v685
    %v687 = vadd.f32 %v686, 1.0
    %v688 = vrcp.pop %v687
    %v689 = vmul.f32 1.0, %v688
    %v690 = vmul.f32 %v682, %v576
    %v691 = vmul.f32 %v676, %v683
    %v692 = vadd.f32 %v690, %v691
    %v693 = vtanh.pop %v692
    %v694 = vmul.f32 %v689, %v693
    %s695 = scalar_lea.vmem [#allocation2], 128
    %v696 = vld [vmem:[%s695] sm:$0xff]
    %v697 = vld [vmem:[%s695 + $0x8] sm:$0xff]
    %v698 = vld [vmem:[%s695 + $0x10] sm:$0xff]
    %v699 = vld [vmem:[%s695 + $0x18] sm:$0xff]
    %v700 = vpack.c.bf16 %v694, %v694
    %701 = vmatprep.subr.bf16.mxu0 %v202
    %702 = vmatpush1.bf16.msra.mxu0 %v201
    %703 = vmatprep.subr.bf16.mxu0 %v198
    %704 = vmatpush1.bf16.msra.mxu0 %v197
    %705 = vmatprep.subr.bf16.mxu0 %v194
    %706 = vmatpush1.bf16.msra.mxu0 %v193
    %707 = vmatprep.subr.bf16.mxu0 %v190
    %708 = vmatpush1.bf16.msra.mxu0 %v189
    %709 = vmatprep.subr.bf16.mxu0 %v186
    %710 = vmatpush1.bf16.msra.mxu0 %v185
    %711 = vmatprep.subr.bf16.mxu0 %v182
    %712 = vmatpush1.bf16.msra.mxu0 %v181
    %713 = vmatprep.subr.bf16.mxu0 %v178
    %714 = vmatpush1.bf16.msra.mxu0 %v177
    %715 = vmatprep.subr.bf16.mxu0 %v174
    %716 = vmatpush1.bf16.msra.mxu0 %v173
    %717 = vmatprep.subr.bf16.mxu0 0
    %718 = vmatpush2.bf16.msra.mxu0 0
    %719 = vmatprep.subr.bf16.mxu0 0
    %720 = vmatpush2.bf16.msra.mxu0 0
    %721 = vmatprep.subr.bf16.mxu0 0
    %722 = vmatpush2.bf16.msra.mxu0 0
    %723 = vmatprep.subr.bf16.mxu0 0
    %724 = vmatpush2.bf16.msra.mxu0 0
    %725 = vmatprep.subr.bf16.mxu0 0
    %726 = vmatpush2.bf16.msra.mxu0 0
    %727 = vmatprep.subr.bf16.mxu0 0
    %728 = vmatpush2.bf16.msra.mxu0 0
    %729 = vmatprep.subr.bf16.mxu0 0
    %730 = vmatpush2.bf16.msra.mxu0 0
    %731 = vmatprep.subr.bf16.mxu0 0
    %732 = vmatpush2.bf16.msra.mxu0 0
    %733 = vmatprep.mubr.bf16.mxu0 0
    %734 = vmatmul.mubr.bf16.gmra.mxu0 %v700
    %v735 = vpop.f32.mrf.mxu0
    %v736 = vadd.f32 0.0, %v735
    %v737 = vpop.f32.mrf.mxu0
    %v738 = vadd.f32 0.0, %v737
    %v739 = vpop.f32.mrf.mxu0
    %v740 = vpop.f32.mrf.mxu0
    %741 = vdwg.mxu0
    %742 = vmatprep.subr.bf16.mxu0 %v204
    %743 = vmatpush1.bf16.msra.mxu0 %v203
    %744 = vmatprep.subr.bf16.mxu0 %v200
    %745 = vmatpush1.bf16.msra.mxu0 %v199
    %746 = vmatprep.subr.bf16.mxu0 %v196
    %747 = vmatpush1.bf16.msra.mxu0 %v195
    %748 = vmatprep.subr.bf16.mxu0 %v192
    %749 = vmatpush1.bf16.msra.mxu0 %v191
    %750 = vmatprep.subr.bf16.mxu0 %v188
    %751 = vmatpush1.bf16.msra.mxu0 %v187
    %752 = vmatprep.subr.bf16.mxu0 %v184
    %753 = vmatpush1.bf16.msra.mxu0 %v183
    %754 = vmatprep.subr.bf16.mxu0 %v180
    %755 = vmatpush1.bf16.msra.mxu0 %v179
    %756 = vmatprep.subr.bf16.mxu0 %v176
    %757 = vmatpush1.bf16.msra.mxu0 %v175
    %758 = vmatprep.subr.bf16.mxu0 0
    %759 = vmatpush2.bf16.msra.mxu0 0
    %760 = vmatprep.subr.bf16.mxu0 0
    %761 = vmatpush2.bf16.msra.mxu0 0
    %762 = vmatprep.subr.bf16.mxu0 0
    %763 = vmatpush2.bf16.msra.mxu0 0
    %764 = vmatprep.subr.bf16.mxu0 0
    %765 = vmatpush2.bf16.msra.mxu0 0
    %766 = vmatprep.subr.bf16.mxu0 0
    %767 = vmatpush2.bf16.msra.mxu0 0
    %768 = vmatprep.subr.bf16.mxu0 0
    %769 = vmatpush2.bf16.msra.mxu0 0
    %770 = vmatprep.subr.bf16.mxu0 0
    %771 = vmatpush2.bf16.msra.mxu0 0
    %772 = vmatprep.subr.bf16.mxu0 0
    %773 = vmatpush2.bf16.msra.mxu0 0
    %774 = vmatprep.mubr.bf16.mxu0 0
    %775 = vmatmul.mubr.bf16.gmra.mxu0 %v700
    %v776 = vpop.f32.mrf.mxu0
    %v777 = vadd.f32 0.0, %v776
    %v778 = vpop.f32.mrf.mxu0
    %v779 = vadd.f32 0.0, %v778
    %v780 = vpop.f32.mrf.mxu0
    %v781 = vpop.f32.mrf.mxu0
    %782 = vdwg.mxu0
    %v783 = vadd.f32 %v696, %v736
    %v784 = vadd.f32 %v697, %v738
    %v785 = vadd.f32 %v698, %v777
    %v786 = vadd.f32 %v699, %v779
    %v787 = vxor.u32 %v783, 2147483648
    %v788 = vmul.f32 %v787, 1.442695
    %v789 = vpow.pop %v788
    %v790 = vadd.f32 %v789, 1.0
    %v791 = vrcp.pop %v790
    %v792 = vmul.f32 1.0, %v791
    %v793 = vxor.u32 %v784, 2147483648
    %v794 = vmul.f32 %v793, 1.442695
    %v795 = vpow.pop %v794
    %v796 = vadd.f32 %v795, 1.0
    %v797 = vrcp.pop %v796
    %v798 = vmul.f32 1.0, %v797
    %v799 = vtanh.pop %v785
    %v800 = vxor.u32 %v786, 2147483648
    %v801 = vmul.f32 %v800, 1.442695
    %v802 = vpow.pop %v801
    %v803 = vadd.f32 %v802, 1.0
    %v804 = vrcp.pop %v803
    %v805 = vmul.f32 1.0, %v804
    %v806 = vmul.f32 %v798, %v692
    %v807 = vmul.f32 %v792, %v799
    %v808 = vadd.f32 %v806, %v807
    %v809 = vtanh.pop %v808
    %v810 = vmul.f32 %v805, %v809
    %s811 = scalar_lea.vmem [#allocation2], 160
    %v812 = vld [vmem:[%s811] sm:$0xff]
    %v813 = vld [vmem:[%s811 + $0x8] sm:$0xff]
    %v814 = vld [vmem:[%s811 + $0x10] sm:$0xff]
    %v815 = vld [vmem:[%s811 + $0x18] sm:$0xff]
    %v816 = vpack.c.bf16 %v810, %v810
    %817 = vmatprep.subr.bf16.mxu0 %v202
    %818 = vmatpush1.bf16.msra.mxu0 %v201
    %819 = vmatprep.subr.bf16.mxu0 %v198
    %820 = vmatpush1.bf16.msra.mxu0 %v197
    %821 = vmatprep.subr.bf16.mxu0 %v194
    %822 = vmatpush1.bf16.msra.mxu0 %v193
    %823 = vmatprep.subr.bf16.mxu0 %v190
    %824 = vmatpush1.bf16.msra.mxu0 %v189
    %825 = vmatprep.subr.bf16.mxu0 %v186
    %826 = vmatpush1.bf16.msra.mxu0 %v185
    %827 = vmatprep.subr.bf16.mxu0 %v182
    %828 = vmatpush1.bf16.msra.mxu0 %v181
    %829 = vmatprep.subr.bf16.mxu0 %v178
    %830 = vmatpush1.bf16.msra.mxu0 %v177
    %831 = vmatprep.subr.bf16.mxu0 %v174
    %832 = vmatpush1.bf16.msra.mxu0 %v173
    %833 = vmatprep.subr.bf16.mxu0 0
    %834 = vmatpush2.bf16.msra.mxu0 0
    %835 = vmatprep.subr.bf16.mxu0 0
    %836 = vmatpush2.bf16.msra.mxu0 0
    %837 = vmatprep.subr.bf16.mxu0 0
    %838 = vmatpush2.bf16.msra.mxu0 0
    %839 = vmatprep.subr.bf16.mxu0 0
    %840 = vmatpush2.bf16.msra.mxu0 0
    %841 = vmatprep.subr.bf16.mxu0 0
    %842 = vmatpush2.bf16.msra.mxu0 0
    %843 = vmatprep.subr.bf16.mxu0 0
    %844 = vmatpush2.bf16.msra.mxu0 0
    %845 = vmatprep.subr.bf16.mxu0 0
    %846 = vmatpush2.bf16.msra.mxu0 0
    %847 = vmatprep.subr.bf16.mxu0 0
    %848 = vmatpush2.bf16.msra.mxu0 0
    %849 = vmatprep.mubr.bf16.mxu0 0
    %850 = vmatmul.mubr.bf16.gmra.mxu0 %v816
    %v851 = vpop.f32.mrf.mxu0
    %v852 = vadd.f32 0.0, %v851
    %v853 = vpop.f32.mrf.mxu0
    %v854 = vadd.f32 0.0, %v853
    %v855 = vpop.f32.mrf.mxu0
    %v856 = vpop.f32.mrf.mxu0
    %857 = vdwg.mxu0
    %858 = vmatprep.subr.bf16.mxu0 %v204
    %859 = vmatpush1.bf16.msra.mxu0 %v203
    %860 = vmatprep.subr.bf16.mxu0 %v200
    %861 = vmatpush1.bf16.msra.mxu0 %v199
    %862 = vmatprep.subr.bf16.mxu0 %v196
    %863 = vmatpush1.bf16.msra.mxu0 %v195
    %864 = vmatprep.subr.bf16.mxu0 %v192
    %865 = vmatpush1.bf16.msra.mxu0 %v191
    %866 = vmatprep.subr.bf16.mxu0 %v188
    %867 = vmatpush1.bf16.msra.mxu0 %v187
    %868 = vmatprep.subr.bf16.mxu0 %v184
    %869 = vmatpush1.bf16.msra.mxu0 %v183
    %870 = vmatprep.subr.bf16.mxu0 %v180
    %871 = vmatpush1.bf16.msra.mxu0 %v179
    %872 = vmatprep.subr.bf16.mxu0 %v176
    %873 = vmatpush1.bf16.msra.mxu0 %v175
    %874 = vmatprep.subr.bf16.mxu0 0
    %875 = vmatpush2.bf16.msra.mxu0 0
    %876 = vmatprep.subr.bf16.mxu0 0
    %877 = vmatpush2.bf16.msra.mxu0 0
    %878 = vmatprep.subr.bf16.mxu0 0
    %879 = vmatpush2.bf16.msra.mxu0 0
    %880 = vmatprep.subr.bf16.mxu0 0
    %881 = vmatpush2.bf16.msra.mxu0 0
    %882 = vmatprep.subr.bf16.mxu0 0
    %883 = vmatpush2.bf16.msra.mxu0 0
    %884 = vmatprep.subr.bf16.mxu0 0
    %885 = vmatpush2.bf16.msra.mxu0 0
    %886 = vmatprep.subr.bf16.mxu0 0
    %887 = vmatpush2.bf16.msra.mxu0 0
    %888 = vmatprep.subr.bf16.mxu0 0
    %889 = vmatpush2.bf16.msra.mxu0 0
    %890 = vmatprep.mubr.bf16.mxu0 0
    %891 = vmatmul.mubr.bf16.gmra.mxu0 %v816
    %v892 = vpop.f32.mrf.mxu0
    %v893 = vadd.f32 0.0, %v892
    %v894 = vpop.f32.mrf.mxu0
    %v895 = vadd.f32 0.0, %v894
    %v896 = vpop.f32.mrf.mxu0
    %v897 = vpop.f32.mrf.mxu0
    %898 = vdwg.mxu0
    %v899 = vadd.f32 %v812, %v852
    %v900 = vadd.f32 %v813, %v854
    %v901 = vadd.f32 %v814, %v893
    %v902 = vadd.f32 %v815, %v895
    %v903 = vxor.u32 %v899, 2147483648
    %v904 = vmul.f32 %v903, 1.442695
    %v905 = vpow.pop %v904
    %v906 = vadd.f32 %v905, 1.0
    %v907 = vrcp.pop %v906
    %v908 = vmul.f32 1.0, %v907
    %v909 = vxor.u32 %v900, 2147483648
    %v910 = vmul.f32 %v909, 1.442695
    %v911 = vpow.pop %v910
    %v912 = vadd.f32 %v911, 1.0
    %v913 = vrcp.pop %v912
    %v914 = vmul.f32 1.0, %v913
    %v915 = vtanh.pop %v901
    %v916 = vxor.u32 %v902, 2147483648
    %v917 = vmul.f32 %v916, 1.442695
    %v918 = vpow.pop %v917
    %v919 = vadd.f32 %v918, 1.0
    %v920 = vrcp.pop %v919
    %v921 = vmul.f32 1.0, %v920
    %v922 = vmul.f32 %v914, %v808
    %v923 = vmul.f32 %v908, %v915
    %v924 = vadd.f32 %v922, %v923
    %v925 = vtanh.pop %v924
    %v926 = vmul.f32 %v921, %v925
    %s927 = scalar_lea.vmem [#allocation2], 192
    %v928 = vld [vmem:[%s927] sm:$0xff]
    %v929 = vld [vmem:[%s927 + $0x8] sm:$0xff]
    %v930 = vld [vmem:[%s927 + $0x10] sm:$0xff]
    %v931 = vld [vmem:[%s927 + $0x18] sm:$0xff]
    %v932 = vpack.c.bf16 %v926, %v926
    %933 = vmatprep.subr.bf16.mxu0 %v202
    %934 = vmatpush1.bf16.msra.mxu0 %v201
    %935 = vmatprep.subr.bf16.mxu0 %v198
    %936 = vmatpush1.bf16.msra.mxu0 %v197
    %937 = vmatprep.subr.bf16.mxu0 %v194
    %938 = vmatpush1.bf16.msra.mxu0 %v193
    %939 = vmatprep.subr.bf16.mxu0 %v190
    %940 = vmatpush1.bf16.msra.mxu0 %v189
    %941 = vmatprep.subr.bf16.mxu0 %v186
    %942 = vmatpush1.bf16.msra.mxu0 %v185
    %943 = vmatprep.subr.bf16.mxu0 %v182
    %944 = vmatpush1.bf16.msra.mxu0 %v181
    %945 = vmatprep.subr.bf16.mxu0 %v178
    %946 = vmatpush1.bf16.msra.mxu0 %v177
    %947 = vmatprep.subr.bf16.mxu0 %v174
    %948 = vmatpush1.bf16.msra.mxu0 %v173
    %949 = vmatprep.subr.bf16.mxu0 0
    %950 = vmatpush2.bf16.msra.mxu0 0
    %951 = vmatprep.subr.bf16.mxu0 0
    %952 = vmatpush2.bf16.msra.mxu0 0
    %953 = vmatprep.subr.bf16.mxu0 0
    %954 = vmatpush2.bf16.msra.mxu0 0
    %955 = vmatprep.subr.bf16.mxu0 0
    %956 = vmatpush2.bf16.msra.mxu0 0
    %957 = vmatprep.subr.bf16.mxu0 0
    %958 = vmatpush2.bf16.msra.mxu0 0
    %959 = vmatprep.subr.bf16.mxu0 0
    %960 = vmatpush2.bf16.msra.mxu0 0
    %961 = vmatprep.subr.bf16.mxu0 0
    %962 = vmatpush2.bf16.msra.mxu0 0
    %963 = vmatprep.subr.bf16.mxu0 0
    %964 = vmatpush2.bf16.msra.mxu0 0
    %965 = vmatprep.mubr.bf16.mxu0 0
    %966 = vmatmul.mubr.bf16.gmra.mxu0 %v932
    %v967 = vpop.f32.mrf.mxu0
    %v968 = vadd.f32 0.0, %v967
    %v969 = vpop.f32.mrf.mxu0
    %v970 = vadd.f32 0.0, %v969
    %v971 = vpop.f32.mrf.mxu0
    %v972 = vpop.f32.mrf.mxu0
    %973 = vdwg.mxu0
    %974 = vmatprep.subr.bf16.mxu0 %v204
    %975 = vmatpush1.bf16.msra.mxu0 %v203
    %976 = vmatprep.subr.bf16.mxu0 %v200
    %977 = vmatpush1.bf16.msra.mxu0 %v199
    %978 = vmatprep.subr.bf16.mxu0 %v196
    %979 = vmatpush1.bf16.msra.mxu0 %v195
    %980 = vmatprep.subr.bf16.mxu0 %v192
    %981 = vmatpush1.bf16.msra.mxu0 %v191
    %982 = vmatprep.subr.bf16.mxu0 %v188
    %983 = vmatpush1.bf16.msra.mxu0 %v187
    %984 = vmatprep.subr.bf16.mxu0 %v184
    %985 = vmatpush1.bf16.msra.mxu0 %v183
    %986 = vmatprep.subr.bf16.mxu0 %v180
    %987 = vmatpush1.bf16.msra.mxu0 %v179
    %988 = vmatprep.subr.bf16.mxu0 %v176
    %989 = vmatpush1.bf16.msra.mxu0 %v175
    %990 = vmatprep.subr.bf16.mxu0 0
    %991 = vmatpush2.bf16.msra.mxu0 0
    %992 = vmatprep.subr.bf16.mxu0 0
    %993 = vmatpush2.bf16.msra.mxu0 0
    %994 = vmatprep.subr.bf16.mxu0 0
    %995 = vmatpush2.bf16.msra.mxu0 0
    %996 = vmatprep.subr.bf16.mxu0 0
    %997 = vmatpush2.bf16.msra.mxu0 0
    %998 = vmatprep.subr.bf16.mxu0 0
    %999 = vmatpush2.bf16.msra.mxu0 0
    %1000 = vmatprep.subr.bf16.mxu0 0
    %1001 = vmatpush2.bf16.msra.mxu0 0
    %1002 = vmatprep.subr.bf16.mxu0 0
    %1003 = vmatpush2.bf16.msra.mxu0 0
    %1004 = vmatprep.subr.bf16.mxu0 0
    %1005 = vmatpush2.bf16.msra.mxu0 0
    %1006 = vmatprep.mubr.bf16.mxu0 0
    %1007 = vmatmul.mubr.bf16.gmra.mxu0 %v932
    %v1008 = vpop.f32.mrf.mxu0
    %v1009 = vadd.f32 0.0, %v1008
    %v1010 = vpop.f32.mrf.mxu0
    %v1011 = vadd.f32 0.0, %v1010
    %v1012 = vpop.f32.mrf.mxu0
    %v1013 = vpop.f32.mrf.mxu0
    %1014 = vdwg.mxu0
    %v1015 = vadd.f32 %v928, %v968
    %v1016 = vadd.f32 %v929, %v970
    %v1017 = vadd.f32 %v930, %v1009
    %v1018 = vadd.f32 %v931, %v1011
    %v1019 = vxor.u32 %v1015, 2147483648
    %v1020 = vmul.f32 %v1019, 1.442695
    %v1021 = vpow.pop %v1020
    %v1022 = vadd.f32 %v1021, 1.0
    %v1023 = vrcp.pop %v1022
    %v1024 = vmul.f32 1.0, %v1023
    %v1025 = vxor.u32 %v1016, 2147483648
    %v1026 = vmul.f32 %v1025, 1.442695
    %v1027 = vpow.pop %v1026
    %v1028 = vadd.f32 %v1027, 1.0
    %v1029 = vrcp.pop %v1028
    %v1030 = vmul.f32 1.0, %v1029
    %v1031 = vtanh.pop %v1017
    %v1032 = vxor.u32 %v1018, 2147483648
    %v1033 = vmul.f32 %v1032, 1.442695
    %v1034 = vpow.pop %v1033
    %v1035 = vadd.f32 %v1034, 1.0
    %v1036 = vrcp.pop %v1035
    %v1037 = vmul.f32 1.0, %v1036
    %v1038 = vmul.f32 %v1030, %v924
    %v1039 = vmul.f32 %v1024, %v1031
    %v1040 = vadd.f32 %v1038, %v1039
    %v1041 = vtanh.pop %v1040
    %v1042 = vmul.f32 %v1037, %v1041
    %s1043 = scalar_lea.vmem [#allocation2], 224
    %v1044 = vld [vmem:[%s1043] sm:$0xff]
    %v1045 = vld [vmem:[%s1043 + $0x8] sm:$0xff]
    %v1046 = vld [vmem:[%s1043 + $0x10] sm:$0xff]
    %v1047 = vld [vmem:[%s1043 + $0x18] sm:$0xff]
    %v1048 = vpack.c.bf16 %v1042, %v1042
    %1049 = vmatprep.subr.bf16.mxu0 %v202
    %1050 = vmatpush1.bf16.msra.mxu0 %v201
    %1051 = vmatprep.subr.bf16.mxu0 %v198
    %1052 = vmatpush1.bf16.msra.mxu0 %v197
    %1053 = vmatprep.subr.bf16.mxu0 %v194
    %1054 = vmatpush1.bf16.msra.mxu0 %v193
    %1055 = vmatprep.subr.bf16.mxu0 %v190
    %1056 = vmatpush1.bf16.msra.mxu0 %v189
    %1057 = vmatprep.subr.bf16.mxu0 %v186
    %1058 = vmatpush1.bf16.msra.mxu0 %v185
    %1059 = vmatprep.subr.bf16.mxu0 %v182
    %1060 = vmatpush1.bf16.msra.mxu0 %v181
    %1061 = vmatprep.subr.bf16.mxu0 %v178
    %1062 = vmatpush1.bf16.msra.mxu0 %v177
    %1063 = vmatprep.subr.bf16.mxu0 %v174
    %1064 = vmatpush1.bf16.msra.mxu0 %v173
    %1065 = vmatprep.subr.bf16.mxu0 0
    %1066 = vmatpush2.bf16.msra.mxu0 0
    %1067 = vmatprep.subr.bf16.mxu0 0
    %1068 = vmatpush2.bf16.msra.mxu0 0
    %1069 = vmatprep.subr.bf16.mxu0 0
    %1070 = vmatpush2.bf16.msra.mxu0 0
    %1071 = vmatprep.subr.bf16.mxu0 0
    %1072 = vmatpush2.bf16.msra.mxu0 0
    %1073 = vmatprep.subr.bf16.mxu0 0
    %1074 = vmatpush2.bf16.msra.mxu0 0
    %1075 = vmatprep.subr.bf16.mxu0 0
    %1076 = vmatpush2.bf16.msra.mxu0 0
    %1077 = vmatprep.subr.bf16.mxu0 0
    %1078 = vmatpush2.bf16.msra.mxu0 0
    %1079 = vmatprep.subr.bf16.mxu0 0
    %1080 = vmatpush2.bf16.msra.mxu0 0
    %1081 = vmatprep.mubr.bf16.mxu0 0
    %1082 = vmatmul.mubr.bf16.gmra.mxu0 %v1048
    %v1083 = vpop.f32.mrf.mxu0
    %v1084 = vadd.f32 0.0, %v1083
    %v1085 = vpop.f32.mrf.mxu0
    %v1086 = vadd.f32 0.0, %v1085
    %v1087 = vpop.f32.mrf.mxu0
    %v1088 = vpop.f32.mrf.mxu0
    %1089 = vdwg.mxu0
    %1090 = vmatprep.subr.bf16.mxu0 %v204
    %1091 = vmatpush1.bf16.msra.mxu0 %v203
    %1092 = vmatprep.subr.bf16.mxu0 %v200
    %1093 = vmatpush1.bf16.msra.mxu0 %v199
    %1094 = vmatprep.subr.bf16.mxu0 %v196
    %1095 = vmatpush1.bf16.msra.mxu0 %v195
    %1096 = vmatprep.subr.bf16.mxu0 %v192
    %1097 = vmatpush1.bf16.msra.mxu0 %v191
    %1098 = vmatprep.subr.bf16.mxu0 %v188
    %1099 = vmatpush1.bf16.msra.mxu0 %v187
    %1100 = vmatprep.subr.bf16.mxu0 %v184
    %1101 = vmatpush1.bf16.msra.mxu0 %v183
    %1102 = vmatprep.subr.bf16.mxu0 %v180
    %1103 = vmatpush1.bf16.msra.mxu0 %v179
    %1104 = vmatprep.subr.bf16.mxu0 %v176
    %1105 = vmatpush1.bf16.msra.mxu0 %v175
    %1106 = vmatprep.subr.bf16.mxu0 0
    %1107 = vmatpush2.bf16.msra.mxu0 0
    %1108 = vmatprep.subr.bf16.mxu0 0
    %1109 = vmatpush2.bf16.msra.mxu0 0
    %1110 = vmatprep.subr.bf16.mxu0 0
    %1111 = vmatpush2.bf16.msra.mxu0 0
    %1112 = vmatprep.subr.bf16.mxu0 0
    %1113 = vmatpush2.bf16.msra.mxu0 0
    %1114 = vmatprep.subr.bf16.mxu0 0
    %1115 = vmatpush2.bf16.msra.mxu0 0
    %1116 = vmatprep.subr.bf16.mxu0 0
    %1117 = vmatpush2.bf16.msra.mxu0 0
    %1118 = vmatprep.subr.bf16.mxu0 0
    %1119 = vmatpush2.bf16.msra.mxu0 0
    %1120 = vmatprep.subr.bf16.mxu0 0
    %1121 = vmatpush2.bf16.msra.mxu0 0
    %1122 = vmatprep.mubr.bf16.mxu0 0
    %1123 = vmatmul.mubr.bf16.gmra.mxu0 %v1048
    %v1124 = vpop.f32.mrf.mxu0
    %v1125 = vadd.f32 0.0, %v1124
    %v1126 = vpop.f32.mrf.mxu0
    %v1127 = vadd.f32 0.0, %v1126
    %v1128 = vpop.f32.mrf.mxu0
    %v1129 = vpop.f32.mrf.mxu0
    %1130 = vdwg.mxu0
    %v1131 = vadd.f32 %v1044, %v1084
    %v1132 = vadd.f32 %v1045, %v1086
    %v1133 = vadd.f32 %v1046, %v1125
    %v1134 = vadd.f32 %v1047, %v1127
    %v1135 = vxor.u32 %v1131, 2147483648
    %v1136 = vmul.f32 %v1135, 1.442695
    %v1137 = vpow.pop %v1136
    %v1138 = vadd.f32 %v1137, 1.0
    %v1139 = vrcp.pop %v1138
    %v1140 = vmul.f32 1.0, %v1139
    %v1141 = vxor.u32 %v1132, 2147483648
    %v1142 = vmul.f32 %v1141, 1.442695
    %v1143 = vpow.pop %v1142
    %v1144 = vadd.f32 %v1143, 1.0
    %v1145 = vrcp.pop %v1144
    %v1146 = vmul.f32 1.0, %v1145
    %v1147 = vtanh.pop %v1133
    %v1148 = vxor.u32 %v1134, 2147483648
    %v1149 = vmul.f32 %v1148, 1.442695
    %v1150 = vpow.pop %v1149
    %v1151 = vadd.f32 %v1150, 1.0
    %v1152 = vrcp.pop %v1151
    %v1153 = vmul.f32 1.0, %v1152
    %v1154 = vmul.f32 %v1146, %v1040
    %v1155 = vmul.f32 %v1140, %v1147
    %v1156 = vadd.f32 %v1154, %v1155
    %v1157 = vtanh.pop %v1156
    %v1158 = vmul.f32 %v1153, %v1157
    %1159 = vst [vmem:[#allocation7] sm:$0xff] %v1158
    // Predicated region
    $region18: #{tpu_custom_call.1} parent=1 // pred_check
      _
    $region19: #{tpu_custom_call.1} parent=1 // pred_check_branch
      %1161 = sbr.rel (0) target = $region21
    $region20: #{tpu_custom_call.1} parent=1 // pred_region
      %s1163 = ssub.s32 128, 128
      %1164 = vsyncadd [#allocation4], %s1163
      %s1166 = sshll.u32 [#allocation7], 4
      %s1167 = int_to_ptr.vmem [resolvable:$true] %s1166
      %1169 = dma.vmem_to_hbm [thread:$0]  %s1167, 128, %s2, [#allocation4]
    $region21: #{tpu_custom_call.1} parent=1 // pred_fallthru
      _
    // Predicated region
    $region22: #{tpu_custom_call.1} parent=1 // pred_check
      _
    $region23: #{tpu_custom_call.1} parent=1 // pred_check_branch
      %1171 = sbr.rel (0) target = $region25
    $region24: #{tpu_custom_call.1} parent=1 // pred_region
      %1172 = dma.done [#allocation4], 128
    $region25: #{tpu_custom_call.1} parent=1 // pred_fallthru
      _
    %1173 = vsyncpa [#allocation3], 1
    %1174 = vsyncpa [#allocation6], 1
    %1175 = vsyncpa [#allocation4], 1

</llo_original>
